<compile_context>
chip_gen: v6e
topology: v6e:2x2x1
jax: 0.10.0
libtpu: 0.0.40
codegen_flags: <defaults>
</compile_context>

<pallas_src>
import math

import jax
import jax.numpy as jnp
from jax.experimental import pallas as pl
from jax.experimental.pallas import tpu as pltpu

# --- model dimensions (small, TPU-tile friendly: D is a multiple of 128) ---
D_MODEL = 128
HEADS = 8
D_K = D_MODEL // HEADS          # 16
D_FF = 256
EPS = 1e-6
_INV_SQRT_DK = 1.0 / math.sqrt(D_K)


def _torch_style_norm(x, alpha, bias):
    """alpha * (x - mean) / (unbiased_std + eps) + bias, over the last axis.

    Reciprocal-multiply instead of a (rows, D) vector divide."""
    d = x.shape[-1]
    mean = jnp.mean(x, axis=-1, keepdims=True)
    c = x - mean
    var = jnp.sum(c * c, axis=-1, keepdims=True) * (1.0 / (d - 1))
    inv = pl.reciprocal(jnp.sqrt(var) + EPS)        # exact (approx=False)
    return alpha * c * inv + bias


def encoder_layer_kernel(
    x_ref,                                    # (TB, S, D) f32
    a1_ref, nb1_ref, a2_ref, nb2_ref,         # Norm params, (1, D) f32
    wqkv_ref, bqkv_ref,                       # fused q/k/v projection (D, 3D), (1, 3D)
    hmask_ref,                                # (D, D) block-diag * 1/sqrt(d_k), f32
    wo_ref, bo_ref,                           # output projection
    w1_ref, bf1_ref, w2_ref, bf2_ref,         # feed-forward
    o_ref,                                    # (TB, S, D) f32
):
    tb, s, d = x_ref.shape
    cdt = wqkv_ref.dtype                      # MXU input dtype (f32 or bf16)

    # Row-flattened residual stream: (TB*S, D) slab for all row-wise work.
    x = x_ref[...].reshape(tb * s, d)

    # ---------------- Norm 1 ----------------
    x2 = _torch_style_norm(x, a1_ref[...], nb1_ref[...])

    # ---------------- fused q/k/v projection (one matmul, N = 3D) -----------
    qkv = jnp.dot(x2.astype(cdt), wqkv_ref[...],
                  preferred_element_type=jnp.float32) + bqkv_ref[...]
    q = qkv[:, 0 * d:1 * d]
    k = qkv[:, 1 * d:2 * d]
    v = qkv[:, 2 * d:3 * d]

    # ---------------- Multi-head attention (mask=None -> no softmax) --------
    # attn_h = (Q_h K_h^T / sqrt(d_k)) V_h == Q_h (K_h^T V_h) / sqrt(d_k), so
    # the head-concatenated result is Q @ block_diag(K_h^T V_h) * 1/sqrt(d_k).
    q3 = q.reshape(tb, s, d).astype(cdt)                  # (TB, S, D)
    k3 = k.reshape(tb, s, d).astype(cdt)                  # (TB, S, D)
    v3 = v.reshape(tb, s, d).astype(cdt)                  # (TB, S, D)

    # K^T V with the contraction written directly over the sequence axis:
    # Mosaic feeds the MXU a transposed-LHS matmul (no materialized transpose).
    kv = jnp.einsum("bsd,bse->bde", k3, v3,
                    preferred_element_type=jnp.float32)   # (TB, D, D)

    # Host-precomputed block-diagonal mask with 1/sqrt(d_k) folded in.
    kv = (kv * hmask_ref[...]).astype(cdt)

    attn = jnp.einsum("bsd,bde->bse", q3, kv,
                      preferred_element_type=jnp.float32)  # (TB, S, D)
    concat = attn.reshape(tb * s, d)                       # same column order as
                                                           # torch .transpose().view()

    attn_out = jnp.dot(concat.astype(cdt), wo_ref[...],
                       preferred_element_type=jnp.float32) + bo_ref[...]
    x = x + attn_out                                       # dropout_1 == identity

    # ---------------- Norm 2 + FeedForward ----------------
    x2 = _torch_style_norm(x, a2_ref[...], nb2_ref[...])
    hdn = jnp.dot(x2.astype(cdt), w1_ref[...],
                  preferred_element_type=jnp.float32) + bf1_ref[...]
    hdn = jnp.maximum(hdn, 0.0)                            # ReLU (ff dropout == id)
    ff = jnp.dot(hdn.astype(cdt), w2_ref[...],
                 preferred_element_type=jnp.float32) + bf2_ref[...]

    o_ref[...] = (x + ff).reshape(tb, s, d)                # dropout_2 == identity


# ------------------------ tiling / VMEM sizing -------------------------------

def _vmem_capacity_bytes():
    """Physical VMEM per TensorCore; conservative (v7x) fallback off-device."""
    try:
        return int(pltpu.get_tpu_info().vmem_capacity_bytes)
    except Exception:
        return 64 * 1024 * 1024


def _pick_vmem_limit_bytes():
    # ~3/4 of physical VMEM, capped at 100 MiB:
    #   v5e/v6e (128 MiB) -> 96 MiB;  v7x (64 MiB) -> 48 MiB (double-buffer headroom).
    return min(100 * 1024 * 1024, (3 * _vmem_capacity_bytes()) // 4)


def _row_bytes(compute_itemsize):
    """Live VMEM bytes per residual-stream row inside one grid step."""
    f32 = 4
    d, dff = D_MODEL, D_FF
    io = 4 * d * f32                                 # in/out tiles, double-buffered
    resid = 4 * d * f32                              # x, x2, attn_out, out (f32)
    acc_f32 = (3 * d + d + dff + d) * f32            # qkv, attn, hdn, ff accumulators
    mxu_in = (d + 3 * d + d + dff) * compute_itemsize  # compute-dtype matmul copies
    return io + resid + acc_f32 + mxu_in


def _pick_batch_tile(batch, seq, *, vmem_limit_bytes, weight_bytes,
                     compute_itemsize, max_rows_per_block):
    """Largest TB that fits the VMEM budget (rows AND the TB*D*D kv scratch)."""
    row_b = _row_bytes(compute_itemsize)
    kv_b = D_MODEL * D_MODEL * (4 + compute_itemsize)   # f32 K^T V + compute copy
    per_example = int(1.25 * (seq * row_b + kv_b))       # 25% headroom (compiler temps)
    budget = vmem_limit_bytes - 2 * weight_bytes - (4 << 20)
    tb = max(1, budget // per_example)
    tb = min(tb, batch, max(1, max_rows_per_block // max(seq, 1)))
    # >= 2 grid steps when B >= 2: shards the "parallel" batch axis across both
    # TensorCores on v7x; costs one ~0.35us step on single-TC gens.
    if batch >= 2:
        tb = min(tb, -(-batch // 2))
    return max(1, int(tb))


# ------------------------------- wrapper --------------------------------------

def encoder_layer(x, params, *, compute_dtype=jnp.bfloat16, max_rows_per_block=8192):
    """Fused EncoderLayer forward.

    compute_dtype: dtype fed to the MXU (weights + matmul activations); norms,
      residuals and accumulation stay f32.  bf16 (default) gives ~2-3x MXU
      throughput on ALL generations (v5e/v6e/v7x MXUs are bf16-native);
      jnp.float32 is bit-faithful to the reference.
    max_rows_per_block: upper cap on TB*S rows per grid step; the actual tile is
      chosen from a generation-aware VMEM budget (incl. the TB*D*D kv scratch).
    """
    B, S, D = x.shape
    assert D == D_MODEL, "kernel is specialized to D_MODEL"
    compute_itemsize = jnp.dtype(compute_dtype).itemsize

    # Pack q/k/v projections once, outside the kernel.
    wqkv = jnp.concatenate([params["wq"], params["wk"], params["wv"]], axis=1)
    bqkv = jnp.concatenate([params["bq"], params["bk"], params["bv"]], axis=1)

    # Host-precomputed block-diagonal head mask with 1/sqrt(d_k) folded in.
    head_ids = jnp.arange(D_MODEL, dtype=jnp.int32) // D_K
    head_mask = jnp.where(head_ids[:, None] == head_ids[None, :],
                          jnp.float32(_INV_SQRT_DK), jnp.float32(0.0))

    ordered = [
        params["a1"], params["nb1"], params["a2"], params["nb2"],
        wqkv.astype(compute_dtype), bqkv.astype(jnp.float32),
        head_mask,
        params["wo"].astype(compute_dtype), params["bo"].astype(jnp.float32),
        params["w1"].astype(compute_dtype), params["bf1"].astype(jnp.float32),
        params["w2"].astype(compute_dtype), params["bf2"].astype(jnp.float32),
    ]
    weight_bytes = sum(int(p.size) * p.dtype.itemsize for p in ordered)

    vmem_limit = _pick_vmem_limit_bytes()
    TB = _pick_batch_tile(B, S,
                          vmem_limit_bytes=vmem_limit,
                          weight_bytes=weight_bytes,
                          compute_itemsize=compute_itemsize,
                          max_rows_per_block=max_rows_per_block)

    # Pad the batch up to a multiple of TB instead of shrinking TB to 1 for
    # awkward / prime B (pad rows are sliced off the output).
    n_blocks = -(-B // TB)
    B_pad = n_blocks * TB
    x_in = x if B_pad == B else jnp.pad(x, ((0, B_pad - B), (0, 0), (0, 0)))
    grid = (n_blocks,)

    def full_spec(shape):
        nd = len(shape)
        return pl.BlockSpec(shape, lambda b, _nd=nd: (0,) * _nd)

    in_specs = [pl.BlockSpec((TB, S, D), lambda b: (b, 0, 0))]
    in_specs += [full_spec(p.shape) for p in ordered]

    # Advisory cost estimate.  Weights have constant index_maps -> fetched once.
    rows = B_pad * S
    flops = (2 * rows * D * 3 * D          # fused qkv projection
             + 2 * B_pad * S * D * D       # K^T V (full DxD, block-diag trick)
             + 2 * B_pad * S * D * D       # Q @ (K^T V)
             + 2 * rows * D * D            # output projection
             + 2 * rows * D * D_FF * 2)    # feed-forward
    bytes_accessed = 2 * int(x_in.size) * x_in.dtype.itemsize + weight_bytes
    cost = pl.CostEstimate(flops=int(flops), transcendentals=2 * rows,
                           bytes_accessed=int(bytes_accessed))

    out = pl.pallas_call(
        encoder_layer_kernel,
        out_shape=jax.ShapeDtypeStruct((B_pad, S, D), jnp.float32),
        grid_spec=pltpu.PrefetchScalarGridSpec(
            num_scalar_prefetch=0,
            grid=grid,
            in_specs=in_specs,
            out_specs=pl.BlockSpec((TB, S, D), lambda b: (b, 0, 0)),
        ),
        compiler_params=pltpu.CompilerParams(
            dimension_semantics=("parallel",),      # megacore-shard the batch axis
            vmem_limit_bytes=int(vmem_limit),
        ),
        cost_estimate=cost,
    )(x_in, *ordered)

    return out if B_pad == B else out[:B]


# --------------------------- params & reference --------------------------------

def make_params(key):
    """Deterministic synthetic parameters.  Linear weights are stored already
    transposed to (in, out) so y = x @ W + b."""
    ks = jax.random.split(key, 12)
    scale = 0.02
    p = {
        "a1": jnp.ones((1, D_MODEL), jnp.float32) + 0.01 * jax.random.normal(ks[0], (1, D_MODEL)),
        "nb1": 0.01 * jax.random.normal(ks[1], (1, D_MODEL)),
        "a2": jnp.ones((1, D_MODEL), jnp.float32) + 0.01 * jax.random.normal(ks[2], (1, D_MODEL)),
        "nb2": 0.01 * jax.random.normal(ks[3], (1, D_MODEL)),
        "wq": scale * jax.random.normal(ks[4], (D_MODEL, D_MODEL)),
        "bq": scale * jax.random.normal(ks[5], (1, D_MODEL)),
        "wk": scale * jax.random.normal(ks[6], (D_MODEL, D_MODEL)),
        "bk": scale * jax.random.normal(ks[7], (1, D_MODEL)),
        "wv": scale * jax.random.normal(ks[8], (D_MODEL, D_MODEL)),
        "bv": scale * jax.random.normal(ks[9], (1, D_MODEL)),
        "wo": scale * jax.random.normal(ks[10], (D_MODEL, D_MODEL)),
        "bo": jnp.zeros((1, D_MODEL), jnp.float32),
        "w1": scale * jax.random.normal(ks[11], (D_MODEL, D_FF)),
        "bf1": jnp.zeros((1, D_FF), jnp.float32),
        "w2": scale * jax.random.normal(jax.random.fold_in(key, 99), (D_FF, D_MODEL)),
        "bf2": jnp.zeros((1, D_MODEL), jnp.float32),
    }
    return {k: v.astype(jnp.float32) for k, v in p.items()}


def reference_forward(x, p):
    """Pure-JAX replica of the PyTorch EncoderLayer.forward (eval mode)."""
    B, S, D = x.shape

    def norm(z, a, b):
        mean = jnp.mean(z, axis=-1, keepdims=True)
        c = z - mean
        std = jnp.sqrt(jnp.sum(c * c, axis=-1, keepdims=True) / (D - 1))
        return a * c / (std + EPS) + b

    x2 = norm(x, p["a1"][0], p["nb1"][0])
    q = x2 @ p["wq"] + p["bq"][0]
    k = x2 @ p["wk"] + p["bk"][0]
    v = x2 @ p["wv"] + p["bv"][0]
    q = q.reshape(B, S, HEADS, D_K).transpose(0, 2, 1, 3)
    k = k.reshape(B, S, HEADS, D_K).transpose(0, 2, 1, 3)
    v = v.reshape(B, S, HEADS, D_K).transpose(0, 2, 1, 3)
    scores = jnp.einsum("bhqd,bhkd->bhqk", q, k) / math.sqrt(D_K)  # no softmax
    attn = jnp.einsum("bhqk,bhkd->bhqd", scores, v)
    concat = attn.transpose(0, 2, 1, 3).reshape(B, S, D)
    x = x + (concat @ p["wo"] + p["bo"][0])
    x2 = norm(x, p["a2"][0], p["nb2"][0])
    ff = jnp.maximum(x2 @ p["w1"] + p["bf1"][0], 0.0) @ p["w2"] + p["bf2"][0]
    return x + ff


if __name__ == "__main__":
    key = jax.random.PRNGKey(0)
    kx, kp = jax.random.split(key)

    B, S = 2, 8
    x = jax.random.normal(kx, (B, S, D_MODEL), dtype=jnp.float32)
    params = make_params(kp)
    ref = reference_forward(x, params)

    # Exact (f32 MXU inputs) path: strict check against the reference.
    out_f32 = jax.block_until_ready(encoder_layer(x, params, compute_dtype=jnp.float32))
    assert out_f32.shape == (B, S, D_MODEL)
    assert jnp.allclose(out_f32, ref, atol=1e-4, rtol=1e-4), "f32 mismatch vs JAX reference"

    # Default bf16 MXU-input / f32-accumulate path; looser tolerance.
    out_bf16 = jax.block_until_ready(encoder_layer(x, params))
    assert jnp.allclose(out_bf16, ref, atol=1e-2, rtol=1e-2), "bf16 mismatch vs JAX reference"

    print("KERNEL_OK")
</pallas_src>

<mosaic_0001>
module attributes {stable_mosaic.version = 11 : i64} {
  func.func @encoder_layer_kernel(%arg0: i32, %arg1: memref<1x8x128xf32, #tpu.memory_space<vmem>>, %arg2: memref<1x128xf32, #tpu.memory_space<vmem>>, %arg3: memref<1x128xf32, #tpu.memory_space<vmem>>, %arg4: memref<1x128xf32, #tpu.memory_space<vmem>>, %arg5: memref<1x128xf32, #tpu.memory_space<vmem>>, %arg6: memref<128x384xf32, #tpu.memory_space<vmem>>, %arg7: memref<1x384xf32, #tpu.memory_space<vmem>>, %arg8: memref<128x128xf32, #tpu.memory_space<vmem>>, %arg9: memref<128x128xf32, #tpu.memory_space<vmem>>, %arg10: memref<1x128xf32, #tpu.memory_space<vmem>>, %arg11: memref<128x256xf32, #tpu.memory_space<vmem>>, %arg12: memref<1x256xf32, #tpu.memory_space<vmem>>, %arg13: memref<256x128xf32, #tpu.memory_space<vmem>>, %arg14: memref<1x128xf32, #tpu.memory_space<vmem>>, %arg15: memref<1x8x128xf32, #tpu.memory_space<vmem>>) attributes {dimension_semantics = [#tpu.dimension_semantics<parallel>], iteration_bounds = array<i64: 2>, scalar_prefetch = 0 : i64, scratch_operands = 0 : i64, tpu.core_type = #tpu.core_type<tc>, window_params = [{transform_indices = @transform_0, window_bounds = array<i64: 1, 8, 128>}, {pipeline_mode = #tpu.pipeline_mode<synchronous>, transform_indices = @transform_1, window_bounds = array<i64: 1, 128>}, {pipeline_mode = #tpu.pipeline_mode<synchronous>, transform_indices = @transform_2, window_bounds = array<i64: 1, 128>}, {pipeline_mode = #tpu.pipeline_mode<synchronous>, transform_indices = @transform_3, window_bounds = array<i64: 1, 128>}, {pipeline_mode = #tpu.pipeline_mode<synchronous>, transform_indices = @transform_4, window_bounds = array<i64: 1, 128>}, {pipeline_mode = #tpu.pipeline_mode<synchronous>, transform_indices = @transform_5, window_bounds = array<i64: 128, 384>}, {pipeline_mode = #tpu.pipeline_mode<synchronous>, transform_indices = @transform_6, window_bounds = array<i64: 1, 384>}, {pipeline_mode = #tpu.pipeline_mode<synchronous>, transform_indices = @transform_7, window_bounds = array<i64: 128, 128>}, {pipeline_mode = #tpu.pipeline_mode<synchronous>, transform_indices = @transform_8, window_bounds = array<i64: 128, 128>}, {pipeline_mode = #tpu.pipeline_mode<synchronous>, transform_indices = @transform_9, window_bounds = array<i64: 1, 128>}, {pipeline_mode = #tpu.pipeline_mode<synchronous>, transform_indices = @transform_10, window_bounds = array<i64: 128, 256>}, {pipeline_mode = #tpu.pipeline_mode<synchronous>, transform_indices = @transform_11, window_bounds = array<i64: 1, 256>}, {pipeline_mode = #tpu.pipeline_mode<synchronous>, transform_indices = @transform_12, window_bounds = array<i64: 256, 128>}, {pipeline_mode = #tpu.pipeline_mode<synchronous>, transform_indices = @transform_13, window_bounds = array<i64: 1, 128>}, {transform_indices = @transform_14, window_bounds = array<i64: 1, 8, 128>}]} {
    %c0 = arith.constant 0 : index
    %c0_0 = arith.constant 0 : index
    %c0_1 = arith.constant 0 : index
    %0 = vector.load %arg1[%c0, %c0_0, %c0_1] : memref<1x8x128xf32, #tpu.memory_space<vmem>>, vector<1x8x128xf32>
    %1 = vector.shape_cast %0 : vector<1x8x128xf32> to vector<8x128xf32>
    %c0_2 = arith.constant 0 : index
    %c0_3 = arith.constant 0 : index
    %2 = vector.load %arg2[%c0_2, %c0_3] : memref<1x128xf32, #tpu.memory_space<vmem>>, vector<1x128xf32>
    %c0_4 = arith.constant 0 : index
    %c0_5 = arith.constant 0 : index
    %3 = vector.load %arg3[%c0_4, %c0_5] : memref<1x128xf32, #tpu.memory_space<vmem>>, vector<1x128xf32>
    %cst = arith.constant dense<0.000000e+00> : vector<8xf32>
    %4 = vector.multi_reduction <add>, %1, %cst [1] : vector<8x128xf32> to vector<8xf32>
    %5 = vector.shape_cast %4 : vector<8xf32> to vector<8x1xf32>
    %cst_6 = arith.constant 1.280000e+02 : f32
    %6 = vector.broadcast %cst_6 : f32 to vector<8x1xf32>
    %7 = arith.divf %5, %6 : vector<8x1xf32>
    %8 = vector.broadcast %7 : vector<8x1xf32> to vector<8x128xf32>
    %9 = arith.subf %1, %8 : vector<8x128xf32>
    %10 = arith.mulf %9, %9 : vector<8x128xf32>
    %cst_7 = arith.constant dense<0.000000e+00> : vector<8xf32>
    %11 = vector.multi_reduction <add>, %10, %cst_7 [1] : vector<8x128xf32> to vector<8xf32>
    %12 = vector.shape_cast %11 : vector<8xf32> to vector<8x1xf32>
    %cst_8 = arith.constant 0.00787401571 : f32
    %13 = vector.broadcast %cst_8 : f32 to vector<8x1xf32>
    %14 = arith.mulf %12, %13 : vector<8x1xf32>
    %15 = math.sqrt %14 : vector<8x1xf32>
    %cst_9 = arith.constant 9.99999997E-7 : f32
    %16 = vector.broadcast %cst_9 : f32 to vector<8x1xf32>
    %17 = arith.addf %15, %16 : vector<8x1xf32>
    %18 = tpu.reciprocal %17 : vector<8x1xf32> -> vector<8x1xf32>
    %19 = vector.broadcast %2 : vector<1x128xf32> to vector<8x128xf32>
    %20 = arith.mulf %19, %9 : vector<8x128xf32>
    %21 = vector.broadcast %18 : vector<8x1xf32> to vector<8x128xf32>
    %22 = arith.mulf %20, %21 : vector<8x128xf32>
    %23 = vector.broadcast %3 : vector<1x128xf32> to vector<8x128xf32>
    %24 = arith.addf %22, %23 : vector<8x128xf32>
    %c0_10 = arith.constant 0 : index
    %c0_11 = arith.constant 0 : index
    %25 = vector.load %arg6[%c0_10, %c0_11] : memref<128x384xf32, #tpu.memory_space<vmem>>, vector<128x384xf32>
    %cst_12 = arith.constant dense<0.000000e+00> : vector<8x384xf32>
    %26 = tpu.matmul %24, %25, %cst_12 {dimension_numbers = #tpu.dot_dimension_numbers<[1], [0], [0], [1], [0, 0, 1, 1], [], []>} : vector<8x128xf32>, vector<128x384xf32>, vector<8x384xf32> -> vector<8x384xf32>
    %c0_13 = arith.constant 0 : index
    %c0_14 = arith.constant 0 : index
    %27 = vector.load %arg7[%c0_13, %c0_14] : memref<1x384xf32, #tpu.memory_space<vmem>>, vector<1x384xf32>
    %28 = vector.broadcast %27 : vector<1x384xf32> to vector<8x384xf32>
    %29 = arith.addf %26, %28 : vector<8x384xf32>
    %30 = vector.extract_strided_slice %29 {offsets = [0, 0], sizes = [8, 128], strides = [1, 1]} : vector<8x384xf32> to vector<8x128xf32>
    %31 = vector.extract_strided_slice %29 {offsets = [0, 128], sizes = [8, 128], strides = [1, 1]} : vector<8x384xf32> to vector<8x128xf32>
    %32 = vector.extract_strided_slice %29 {offsets = [0, 256], sizes = [8, 128], strides = [1, 1]} : vector<8x384xf32> to vector<8x128xf32>
    %33 = vector.shape_cast %30 : vector<8x128xf32> to vector<1x8x128xf32>
    %34 = vector.shape_cast %31 : vector<8x128xf32> to vector<1x8x128xf32>
    %35 = vector.shape_cast %32 : vector<8x128xf32> to vector<1x8x128xf32>
    "tpu.trace_start"() <{level = 10 : i32, message = "bsd,bse->bde"}> : () -> ()
    %cst_15 = arith.constant dense<0.000000e+00> : vector<1x128x128xf32>
    %36 = tpu.matmul %34, %35, %cst_15 {dimension_numbers = #tpu.dot_dimension_numbers<[1], [1], [2], [2], [0, 0, 0, 2, 1, 2], [0], [0]>} : vector<1x8x128xf32>, vector<1x8x128xf32>, vector<1x128x128xf32> -> vector<1x128x128xf32>
    "tpu.trace_stop"() : () -> ()
    %c0_16 = arith.constant 0 : index
    %c0_17 = arith.constant 0 : index
    %37 = vector.load %arg8[%c0_16, %c0_17] : memref<128x128xf32, #tpu.memory_space<vmem>>, vector<128x128xf32>
    %38 = vector.shape_cast %37 : vector<128x128xf32> to vector<1x128x128xf32>
    %39 = arith.mulf %36, %38 : vector<1x128x128xf32>
    "tpu.trace_start"() <{level = 10 : i32, message = "bsd,bde->bse"}> : () -> ()
    %cst_18 = arith.constant dense<0.000000e+00> : vector<1x8x128xf32>
    %40 = tpu.matmul %33, %39, %cst_18 {dimension_numbers = #tpu.dot_dimension_numbers<[2], [1], [1], [2], [0, 0, 0, 1, 1, 2], [0], [0]>} : vector<1x8x128xf32>, vector<1x128x128xf32>, vector<1x8x128xf32> -> vector<1x8x128xf32>
    "tpu.trace_stop"() : () -> ()
    %41 = vector.shape_cast %40 : vector<1x8x128xf32> to vector<8x128xf32>
    %c0_19 = arith.constant 0 : index
    %c0_20 = arith.constant 0 : index
    %42 = vector.load %arg9[%c0_19, %c0_20] : memref<128x128xf32, #tpu.memory_space<vmem>>, vector<128x128xf32>
    %cst_21 = arith.constant dense<0.000000e+00> : vector<8x128xf32>
    %43 = tpu.matmul %41, %42, %cst_21 {dimension_numbers = #tpu.dot_dimension_numbers<[1], [0], [0], [1], [0, 0, 1, 1], [], []>} : vector<8x128xf32>, vector<128x128xf32>, vector<8x128xf32> -> vector<8x128xf32>
    %c0_22 = arith.constant 0 : index
    %c0_23 = arith.constant 0 : index
    %44 = vector.load %arg10[%c0_22, %c0_23] : memref<1x128xf32, #tpu.memory_space<vmem>>, vector<1x128xf32>
    %45 = vector.broadcast %44 : vector<1x128xf32> to vector<8x128xf32>
    %46 = arith.addf %43, %45 : vector<8x128xf32>
    %47 = arith.addf %1, %46 : vector<8x128xf32>
    %c0_24 = arith.constant 0 : index
    %c0_25 = arith.constant 0 : index
    %48 = vector.load %arg4[%c0_24, %c0_25] : memref<1x128xf32, #tpu.memory_space<vmem>>, vector<1x128xf32>
    %c0_26 = arith.constant 0 : index
    %c0_27 = arith.constant 0 : index
    %49 = vector.load %arg5[%c0_26, %c0_27] : memref<1x128xf32, #tpu.memory_space<vmem>>, vector<1x128xf32>
    %cst_28 = arith.constant dense<0.000000e+00> : vector<8xf32>
    %50 = vector.multi_reduction <add>, %47, %cst_28 [1] : vector<8x128xf32> to vector<8xf32>
    %51 = vector.shape_cast %50 : vector<8xf32> to vector<8x1xf32>
    %cst_29 = arith.constant 1.280000e+02 : f32
    %52 = vector.broadcast %cst_29 : f32 to vector<8x1xf32>
    %53 = arith.divf %51, %52 : vector<8x1xf32>
    %54 = vector.broadcast %53 : vector<8x1xf32> to vector<8x128xf32>
    %55 = arith.subf %47, %54 : vector<8x128xf32>
    %56 = arith.mulf %55, %55 : vector<8x128xf32>
    %cst_30 = arith.constant dense<0.000000e+00> : vector<8xf32>
    %57 = vector.multi_reduction <add>, %56, %cst_30 [1] : vector<8x128xf32> to vector<8xf32>
    %58 = vector.shape_cast %57 : vector<8xf32> to vector<8x1xf32>
    %cst_31 = arith.constant 0.00787401571 : f32
    %59 = vector.broadcast %cst_31 : f32 to vector<8x1xf32>
    %60 = arith.mulf %58, %59 : vector<8x1xf32>
    %61 = math.sqrt %60 : vector<8x1xf32>
    %cst_32 = arith.constant 9.99999997E-7 : f32
    %62 = vector.broadcast %cst_32 : f32 to vector<8x1xf32>
    %63 = arith.addf %61, %62 : vector<8x1xf32>
    %64 = tpu.reciprocal %63 : vector<8x1xf32> -> vector<8x1xf32>
    %65 = vector.broadcast %48 : vector<1x128xf32> to vector<8x128xf32>
    %66 = arith.mulf %65, %55 : vector<8x128xf32>
    %67 = vector.broadcast %64 : vector<8x1xf32> to vector<8x128xf32>
    %68 = arith.mulf %66, %67 : vector<8x128xf32>
    %69 = vector.broadcast %49 : vector<1x128xf32> to vector<8x128xf32>
    %70 = arith.addf %68, %69 : vector<8x128xf32>
    %c0_33 = arith.constant 0 : index
    %c0_34 = arith.constant 0 : index
    %71 = vector.load %arg11[%c0_33, %c0_34] : memref<128x256xf32, #tpu.memory_space<vmem>>, vector<128x256xf32>
    %cst_35 = arith.constant dense<0.000000e+00> : vector<8x256xf32>
    %72 = tpu.matmul %70, %71, %cst_35 {dimension_numbers = #tpu.dot_dimension_numbers<[1], [0], [0], [1], [0, 0, 1, 1], [], []>} : vector<8x128xf32>, vector<128x256xf32>, vector<8x256xf32> -> vector<8x256xf32>
    %c0_36 = arith.constant 0 : index
    %c0_37 = arith.constant 0 : index
    %73 = vector.load %arg12[%c0_36, %c0_37] : memref<1x256xf32, #tpu.memory_space<vmem>>, vector<1x256xf32>
    %74 = vector.broadcast %73 : vector<1x256xf32> to vector<8x256xf32>
    %75 = arith.addf %72, %74 : vector<8x256xf32>
    %cst_38 = arith.constant 0.000000e+00 : f32
    %76 = vector.broadcast %cst_38 : f32 to vector<8x256xf32>
    %77 = arith.maximumf %75, %76 : vector<8x256xf32>
    %c0_39 = arith.constant 0 : index
    %c0_40 = arith.constant 0 : index
    %78 = vector.load %arg13[%c0_39, %c0_40] : memref<256x128xf32, #tpu.memory_space<vmem>>, vector<256x128xf32>
    %cst_41 = arith.constant dense<0.000000e+00> : vector<8x128xf32>
    %79 = tpu.matmul %77, %78, %cst_41 {dimension_numbers = #tpu.dot_dimension_numbers<[1], [0], [0], [1], [0, 0, 1, 1], [], []>} : vector<8x256xf32>, vector<256x128xf32>, vector<8x128xf32> -> vector<8x128xf32>
    %c0_42 = arith.constant 0 : index
    %c0_43 = arith.constant 0 : index
    %80 = vector.load %arg14[%c0_42, %c0_43] : memref<1x128xf32, #tpu.memory_space<vmem>>, vector<1x128xf32>
    %81 = vector.broadcast %80 : vector<1x128xf32> to vector<8x128xf32>
    %82 = arith.addf %79, %81 : vector<8x128xf32>
    %83 = arith.addf %47, %82 : vector<8x128xf32>
    %84 = vector.shape_cast %83 : vector<8x128xf32> to vector<1x8x128xf32>
    %c0_44 = arith.constant 0 : index
    %c0_45 = arith.constant 0 : index
    %c0_46 = arith.constant 0 : index
    %85 = vector.load %arg15[%c0_44, %c0_45, %c0_46] : memref<1x8x128xf32, #tpu.memory_space<vmem>>, vector<1x8x128xf32>
    tpu.vector_store %arg15[%c0_44, %c0_45, %c0_46], %84 {strides = array<i32>} : memref<1x8x128xf32, #tpu.memory_space<vmem>>, vector<1x8x128xf32>,
    return
  }
  func.func @transform_0(%arg0: i32) -> (i32, i32, i32) {
    %c0_i32 = arith.constant 0 : i32
    %c0_i32_0 = arith.constant 0 : i32
    %c0_i32_1 = arith.constant 0 : i32
    return %arg0, %c0_i32, %c0_i32_0 : i32, i32, i32
  }
  func.func @transform_1(%arg0: i32) -> (i32, i32) {
    %c0_i32 = arith.constant 0 : i32
    %c0_i32_0 = arith.constant 0 : i32
    %c0_i32_1 = arith.constant 0 : i32
    return %c0_i32, %c0_i32_0 : i32, i32
  }
  func.func @transform_2(%arg0: i32) -> (i32, i32) {
    %c0_i32 = arith.constant 0 : i32
    %c0_i32_0 = arith.constant 0 : i32
    %c0_i32_1 = arith.constant 0 : i32
    return %c0_i32, %c0_i32_0 : i32, i32
  }
  func.func @transform_3(%arg0: i32) -> (i32, i32) {
    %c0_i32 = arith.constant 0 : i32
    %c0_i32_0 = arith.constant 0 : i32
    %c0_i32_1 = arith.constant 0 : i32
    return %c0_i32, %c0_i32_0 : i32, i32
  }
  func.func @transform_4(%arg0: i32) -> (i32, i32) {
    %c0_i32 = arith.constant 0 : i32
    %c0_i32_0 = arith.constant 0 : i32
    %c0_i32_1 = arith.constant 0 : i32
    return %c0_i32, %c0_i32_0 : i32, i32
  }
  func.func @transform_5(%arg0: i32) -> (i32, i32) {
    %c0_i32 = arith.constant 0 : i32
    %c0_i32_0 = arith.constant 0 : i32
    %c0_i32_1 = arith.constant 0 : i32
    return %c0_i32, %c0_i32_0 : i32, i32
  }
  func.func @transform_6(%arg0: i32) -> (i32, i32) {
    %c0_i32 = arith.constant 0 : i32
    %c0_i32_0 = arith.constant 0 : i32
    %c0_i32_1 = arith.constant 0 : i32
    return %c0_i32, %c0_i32_0 : i32, i32
  }
  func.func @transform_7(%arg0: i32) -> (i32, i32) {
    %c0_i32 = arith.constant 0 : i32
    %c0_i32_0 = arith.constant 0 : i32
    %c0_i32_1 = arith.constant 0 : i32
    return %c0_i32, %c0_i32_0 : i32, i32
  }
  func.func @transform_8(%arg0: i32) -> (i32, i32) {
    %c0_i32 = arith.constant 0 : i32
    %c0_i32_0 = arith.constant 0 : i32
    %c0_i32_1 = arith.constant 0 : i32
    return %c0_i32, %c0_i32_0 : i32, i32
  }
  func.func @transform_9(%arg0: i32) -> (i32, i32) {
    %c0_i32 = arith.constant 0 : i32
    %c0_i32_0 = arith.constant 0 : i32
    %c0_i32_1 = arith.constant 0 : i32
    return %c0_i32, %c0_i32_0 : i32, i32
  }
  func.func @transform_10(%arg0: i32) -> (i32, i32) {
    %c0_i32 = arith.constant 0 : i32
    %c0_i32_0 = arith.constant 0 : i32
    %c0_i32_1 = arith.constant 0 : i32
    return %c0_i32, %c0_i32_0 : i32, i32
  }
  func.func @transform_11(%arg0: i32) -> (i32, i32) {
    %c0_i32 = arith.constant 0 : i32
    %c0_i32_0 = arith.constant 0 : i32
    %c0_i32_1 = arith.constant 0 : i32
    return %c0_i32, %c0_i32_0 : i32, i32
  }
  func.func @transform_12(%arg0: i32) -> (i32, i32) {
    %c0_i32 = arith.constant 0 : i32
    %c0_i32_0 = arith.constant 0 : i32
    %c0_i32_1 = arith.constant 0 : i32
    return %c0_i32, %c0_i32_0 : i32, i32
  }
  func.func @transform_13(%arg0: i32) -> (i32, i32) {
    %c0_i32 = arith.constant 0 : i32
    %c0_i32_0 = arith.constant 0 : i32
    %c0_i32_1 = arith.constant 0 : i32
    return %c0_i32, %c0_i32_0 : i32, i32
  }
  func.func @transform_14(%arg0: i32) -> (i32, i32, i32) {
    %c0_i32 = arith.constant 0 : i32
    %c0_i32_0 = arith.constant 0 : i32
    %c0_i32_1 = arith.constant 0 : i32
    return %arg0, %c0_i32, %c0_i32_0 : i32, i32, i32
  }
}

</mosaic_0001>

<llo_original>
// kernel: tpu_custom_call.1
$region0: #{tpu_custom_call.1}
  #allocation0 [shape = 'u32[]', space=smem, size = 0x4, offset = 0x4, fixed_abs, tag = 'smem constant byte address 0x4 - core index']
  #allocation1 [shape = 'u32[144,128]{1,0:T(1,128)}', space=vmem, size = 0x12000, scoped, tag = 'internal scratch']
  %s0 = inlined_call_operand.hbm [shape: f32[2,8,128], index: 0, kind: input, shape index: {}]
  %s1 = inlined_call_operand.hbm [shape: f32[1,128], index: 1, kind: input, shape index: {}]
  %s2 = inlined_call_operand.hbm [shape: f32[1,128], index: 2, kind: input, shape index: {}]
  %s3 = inlined_call_operand.hbm [shape: f32[1,128], index: 3, kind: input, shape index: {}]
  %s4 = inlined_call_operand.vmem [shape: f32[1,128], index: 4, kind: input, shape index: {}]
  %s5 = inlined_call_operand.hbm [shape: f32[128,384], index: 5, kind: input, shape index: {}]
  %s6 = inlined_call_operand.vmem [shape: f32[1,384], index: 6, kind: input, shape index: {}]
  %s7 = inlined_call_operand.hbm [shape: f32[128,128], index: 7, kind: input, shape index: {}]
  %s8 = inlined_call_operand.hbm [shape: f32[128,128], index: 8, kind: input, shape index: {}]
  %s9 = inlined_call_operand.vmem [shape: f32[1,128], index: 9, kind: input, shape index: {}]
  %s10 = inlined_call_operand.hbm [shape: f32[128,256], index: 10, kind: input, shape index: {}]
  %s11 = inlined_call_operand.vmem [shape: f32[1,256], index: 11, kind: input, shape index: {}]
  %s12 = inlined_call_operand.hbm [shape: f32[256,128], index: 12, kind: input, shape index: {}]
  %s13 = inlined_call_operand.vmem [shape: f32[1,128], index: 13, kind: input, shape index: {}]
  %s14 = inlined_call_operand.hbm [shape: f32[2,8,128], index: 14, kind: output, shape index: {}]
  %s15 = sld [smem:[#allocation0]]
  $region125: #{tpu_custom_call.1} parent=0
    _
  %s17 = ssub.s32 1, %s15
  %s18 = scalar_select 0, %s17, %s15
  $region1: #{tpu_custom_call.1} parent=0
    #allocation2 [shape = 'u8[8192]{0}', space=vmem, size = 0x2000, scoped, tag = 'input window, operand 0']
    #allocation3 [shape = 's32[2]{0}', space=sflag, size = 0x8, scoped, tag = 'scoped memory for tpu_custom_call.1']
    #allocation4 [shape = 's32[2]{0}', space=sflag, size = 0x8, scoped, tag = 'scoped memory for tpu_custom_call.1']
    #allocation5 [shape = 'u8[512]{0}', space=vmem, size = 0x400, scoped, tag = 'input window, operand 1, single buffered']
    #allocation6 [shape = 's32[1]{0}', space=sflag, size = 0x4, scoped, tag = 'scoped memory for tpu_custom_call.1']
    #allocation7 [shape = 'u8[512]{0}', space=vmem, size = 0x400, scoped, tag = 'input window, operand 2, single buffered']
    #allocation8 [shape = 'u8[512]{0}', space=vmem, size = 0x400, scoped, tag = 'input window, operand 3, single buffered']
    #allocation9 [shape = 's32[1]{0}', space=sflag, size = 0x4, scoped, tag = 'scoped memory for tpu_custom_call.1']
    #allocation10 [shape = 'u8[196608]{0}', space=vmem, size = 0x30000, scoped, tag = 'input window, operand 5, single buffered']
    #allocation11 [shape = 'u8[65536]{0}', space=vmem, size = 0x10000, scoped, tag = 'input window, operand 7, single buffered']
    #allocation12 [shape = 's32[1]{0}', space=sflag, size = 0x4, scoped, tag = 'scoped memory for tpu_custom_call.1']
    #allocation13 [shape = 'u8[65536]{0}', space=vmem, size = 0x10000, scoped, tag = 'input window, operand 8, single buffered']
    #allocation14 [shape = 'u8[131072]{0}', space=vmem, size = 0x20000, scoped, tag = 'input window, operand 10, single buffered']
    #allocation15 [shape = 's32[1]{0}', space=sflag, size = 0x4, scoped, tag = 'scoped memory for tpu_custom_call.1']
    #allocation16 [shape = 'u8[131072]{0}', space=vmem, size = 0x20000, scoped, tag = 'input window, operand 12, single buffered']
    #allocation17 [shape = 'u8[8192]{0}', space=vmem, size = 0x2000, scoped, tag = 'output window, operand 0']
    %19 = vsyncpa [#allocation3], 0
    %s20 = scalar_lea.sflag [#allocation3], 1
    %21 = vsyncpa %s20, 0
    %22 = vsyncpa [#allocation6], 0
    %23 = vsyncpa [#allocation9], 0
    %24 = vsyncpa [#allocation12], 0
    %25 = vsyncpa [#allocation15], 0
    %26 = vsyncpa [#allocation4], 0
    %s27 = scalar_lea.sflag [#allocation4], 1
    %28 = vsyncpa %s27, 0
    loop: start=0, step=1, limit=4
    $region2: #{tpu_custom_call.1} parent=1 // loop_pre_header
      _
    $region3: #{tpu_custom_call.1} parent=1 // loop_header
      %s30 = sphi 0, %s34
      %p31 = scmp.ge.s32.totalorder %s30, 4
      %s40 = sphi 0, %s42
      %s43 = sphi 0, %s40
      %s44 = sphi 0, %s43
      %s60 = sphi 0, %s44
      %s64 = sphi 0, %s64
      %s66 = sphi 0, %s64
      %s67 = sphi 0, %s66
      %s81 = sphi 0, %s67
      %s85 = sphi 0, %s85
      %s87 = sphi 0, %s85
      %s88 = sphi 0, %s87
      %s102 = sphi 0, %s88
      %s106 = sphi 0, %s106
      %s108 = sphi 0, %s106
      %s109 = sphi 0, %s108
      %s123 = sphi 0, %s109
      %s127 = sphi 0, %s127
      %s129 = sphi 0, %s127
      %s130 = sphi 0, %s129
      %s144 = sphi 0, %s130
      %s148 = sphi 0, %s148
      %s150 = sphi 0, %s148
      %s151 = sphi 0, %s150
      %s165 = sphi 0, %s151
      %s169 = sphi 0, %s169
      %s171 = sphi 0, %s169
      %s172 = sphi 0, %s171
      %s186 = sphi 0, %s172
      %s190 = sphi 0, %s190
      %s192 = sphi 0, %s190
      %s193 = sphi 0, %s192
      %s207 = sphi 0, %s193
      %s211 = sphi 0, %s211
      %s213 = sphi 0, %s211
      %s214 = sphi 0, %s213
      %s228 = sphi 0, %s214
      %s232 = sphi 0, %s232
      %s234 = sphi 0, %s232
      %s235 = sphi 0, %s234
      %s249 = sphi 0, %s235
      %s253 = sphi 0, %s253
      %s255 = sphi 0, %s253
      %s256 = sphi 0, %s255
      %s270 = sphi 0, %s256
      %s274 = sphi 0, %s274
      %s276 = sphi 0, %s274
      %s277 = sphi 0, %s276
      %s291 = sphi 0, %s277
      %s295 = sphi 0, %s295
      %s297 = sphi 0, %s295
      %s298 = sphi 0, %s297
      %s312 = sphi 0, %s298
      %s316 = sphi 0, %s316
      %s318 = sphi 0, %s316
      %s319 = sphi 0, %s318
      %s333 = sphi 0, %s319
      %s339 = sphi 0, %s341
      %s342 = sphi 0, %s339
      %s343 = sphi 0, %s342
      %s359 = sphi 0, %s343
    $region4: #{tpu_custom_call.1} parent=1 // loop_header_branch
      %33 = sbr.rel (%p31) target = $region8
    $region5: #{tpu_custom_call.1} parent=1 // loop_body
      %s35 = ssub.s32 %s30, 1
      %s36 = ssub.s32 %s30, 2
      %s37 = sadd.s32 %s30, 1
      %s38 = ssub.s32 %s30, %s37
      %p39 = scmp.eq.s32.totalorder %s38, 0
      %s41 = sadd.s32 %s40, 1
      %s42 = scalar_select %p39, %s40, %s41
      %p45 = pneg %p39
      %p46 = scmp.eq.s32.totalorder %s30, 1
      %p47 = por %p45, %p46
      %p48 = scmp.ne.s32.totalorder %s40, %s43
      %p49 = scmp.eq.s32.totalorder %s30, 0
      %p50 = por %p48, %p49
      %p51 = scmp.ne.s32.totalorder %s40, %s43
      %p52 = scmp.eq.s32.totalorder %s35, 1
      %p53 = por %p51, %p52
      %p54 = scmp.ne.s32.totalorder %s43, %s44
      %p55 = scmp.eq.s32.totalorder %s35, 0
      %p56 = por %p54, %p55
      %p57 = scmp.ne.s32.totalorder %s43, %s44
      %p58 = scmp.eq.s32.totalorder %s36, 1
      %p59 = por %p57, %p58
      %p61 = scmp.ne.s32.totalorder %s44, %s60
      %p62 = scmp.eq.s32.totalorder %s36, 0
      %p63 = por %p61, %p62
      %s65 = sadd.s32 %s64, 1
      %p68 = scmp.eq.s32.totalorder %s30, 1
      %p69 = scmp.ne.s32.totalorder %s64, %s66
      %p70 = scmp.eq.s32.totalorder %s30, 0
      %p71 = por %p69, %p70
      %p72 = scmp.ne.s32.totalorder %s64, %s66
      %p73 = scmp.eq.s32.totalorder %s35, 1
      %p74 = por %p72, %p73
      %p75 = scmp.ne.s32.totalorder %s66, %s67
      %p76 = scmp.eq.s32.totalorder %s35, 0
      %p77 = por %p75, %p76
      %p78 = scmp.ne.s32.totalorder %s66, %s67
      %p79 = scmp.eq.s32.totalorder %s36, 1
      %p80 = por %p78, %p79
      %p82 = scmp.ne.s32.totalorder %s67, %s81
      %p83 = scmp.eq.s32.totalorder %s36, 0
      %p84 = por %p82, %p83
      %s86 = sadd.s32 %s85, 1
      %p89 = scmp.eq.s32.totalorder %s30, 1
      %p90 = scmp.ne.s32.totalorder %s85, %s87
      %p91 = scmp.eq.s32.totalorder %s30, 0
      %p92 = por %p90, %p91
      %p93 = scmp.ne.s32.totalorder %s85, %s87
      %p94 = scmp.eq.s32.totalorder %s35, 1
      %p95 = por %p93, %p94
      %p96 = scmp.ne.s32.totalorder %s87, %s88
      %p97 = scmp.eq.s32.totalorder %s35, 0
      %p98 = por %p96, %p97
      %p99 = scmp.ne.s32.totalorder %s87, %s88
      %p100 = scmp.eq.s32.totalorder %s36, 1
      %p101 = por %p99, %p100
      %p103 = scmp.ne.s32.totalorder %s88, %s102
      %p104 = scmp.eq.s32.totalorder %s36, 0
      %p105 = por %p103, %p104
      %s107 = sadd.s32 %s106, 1
      %p110 = scmp.eq.s32.totalorder %s30, 1
      %p111 = scmp.ne.s32.totalorder %s106, %s108
      %p112 = scmp.eq.s32.totalorder %s30, 0
      %p113 = por %p111, %p112
      %p114 = scmp.ne.s32.totalorder %s106, %s108
      %p115 = scmp.eq.s32.totalorder %s35, 1
      %p116 = por %p114, %p115
      %p117 = scmp.ne.s32.totalorder %s108, %s109
      %p118 = scmp.eq.s32.totalorder %s35, 0
      %p119 = por %p117, %p118
      %p120 = scmp.ne.s32.totalorder %s108, %s109
      %p121 = scmp.eq.s32.totalorder %s36, 1
      %p122 = por %p120, %p121
      %p124 = scmp.ne.s32.totalorder %s109, %s123
      %p125 = scmp.eq.s32.totalorder %s36, 0
      %p126 = por %p124, %p125
      %s128 = sadd.s32 %s127, 1
      %p131 = scmp.eq.s32.totalorder %s30, 1
      %p132 = scmp.ne.s32.totalorder %s127, %s129
      %p133 = scmp.eq.s32.totalorder %s30, 0
      %p134 = por %p132, %p133
      %p135 = scmp.ne.s32.totalorder %s127, %s129
      %p136 = scmp.eq.s32.totalorder %s35, 1
      %p137 = por %p135, %p136
      %p138 = scmp.ne.s32.totalorder %s129, %s130
      %p139 = scmp.eq.s32.totalorder %s35, 0
      %p140 = por %p138, %p139
      %p141 = scmp.ne.s32.totalorder %s129, %s130
      %p142 = scmp.eq.s32.totalorder %s36, 1
      %p143 = por %p141, %p142
      %p145 = scmp.ne.s32.totalorder %s130, %s144
      %p146 = scmp.eq.s32.totalorder %s36, 0
      %p147 = por %p145, %p146
      %s149 = sadd.s32 %s148, 1
      %p152 = scmp.eq.s32.totalorder %s30, 1
      %p153 = scmp.ne.s32.totalorder %s148, %s150
      %p154 = scmp.eq.s32.totalorder %s30, 0
      %p155 = por %p153, %p154
      %p156 = scmp.ne.s32.totalorder %s148, %s150
      %p157 = scmp.eq.s32.totalorder %s35, 1
      %p158 = por %p156, %p157
      %p159 = scmp.ne.s32.totalorder %s150, %s151
      %p160 = scmp.eq.s32.totalorder %s35, 0
      %p161 = por %p159, %p160
      %p162 = scmp.ne.s32.totalorder %s150, %s151
      %p163 = scmp.eq.s32.totalorder %s36, 1
      %p164 = por %p162, %p163
      %p166 = scmp.ne.s32.totalorder %s151, %s165
      %p167 = scmp.eq.s32.totalorder %s36, 0
      %p168 = por %p166, %p167
      %s170 = sadd.s32 %s169, 1
      %p173 = scmp.eq.s32.totalorder %s30, 1
      %p174 = scmp.ne.s32.totalorder %s169, %s171
      %p175 = scmp.eq.s32.totalorder %s30, 0
      %p176 = por %p174, %p175
      %p177 = scmp.ne.s32.totalorder %s169, %s171
      %p178 = scmp.eq.s32.totalorder %s35, 1
      %p179 = por %p177, %p178
      %p180 = scmp.ne.s32.totalorder %s171, %s172
      %p181 = scmp.eq.s32.totalorder %s35, 0
      %p182 = por %p180, %p181
      %p183 = scmp.ne.s32.totalorder %s171, %s172
      %p184 = scmp.eq.s32.totalorder %s36, 1
      %p185 = por %p183, %p184
      %p187 = scmp.ne.s32.totalorder %s172, %s186
      %p188 = scmp.eq.s32.totalorder %s36, 0
      %p189 = por %p187, %p188
      %s191 = sadd.s32 %s190, 1
      %p194 = scmp.eq.s32.totalorder %s30, 1
      %p195 = scmp.ne.s32.totalorder %s190, %s192
      %p196 = scmp.eq.s32.totalorder %s30, 0
      %p197 = por %p195, %p196
      %p198 = scmp.ne.s32.totalorder %s190, %s192
      %p199 = scmp.eq.s32.totalorder %s35, 1
      %p200 = por %p198, %p199
      %p201 = scmp.ne.s32.totalorder %s192, %s193
      %p202 = scmp.eq.s32.totalorder %s35, 0
      %p203 = por %p201, %p202
      %p204 = scmp.ne.s32.totalorder %s192, %s193
      %p205 = scmp.eq.s32.totalorder %s36, 1
      %p206 = por %p204, %p205
      %p208 = scmp.ne.s32.totalorder %s193, %s207
      %p209 = scmp.eq.s32.totalorder %s36, 0
      %p210 = por %p208, %p209
      %s212 = sadd.s32 %s211, 1
      %p215 = scmp.eq.s32.totalorder %s30, 1
      %p216 = scmp.ne.s32.totalorder %s211, %s213
      %p217 = scmp.eq.s32.totalorder %s30, 0
      %p218 = por %p216, %p217
      %p219 = scmp.ne.s32.totalorder %s211, %s213
      %p220 = scmp.eq.s32.totalorder %s35, 1
      %p221 = por %p219, %p220
      %p222 = scmp.ne.s32.totalorder %s213, %s214
      %p223 = scmp.eq.s32.totalorder %s35, 0
      %p224 = por %p222, %p223
      %p225 = scmp.ne.s32.totalorder %s213, %s214
      %p226 = scmp.eq.s32.totalorder %s36, 1
      %p227 = por %p225, %p226
      %p229 = scmp.ne.s32.totalorder %s214, %s228
      %p230 = scmp.eq.s32.totalorder %s36, 0
      %p231 = por %p229, %p230
      %s233 = sadd.s32 %s232, 1
      %p236 = scmp.eq.s32.totalorder %s30, 1
      %p237 = scmp.ne.s32.totalorder %s232, %s234
      %p238 = scmp.eq.s32.totalorder %s30, 0
      %p239 = por %p237, %p238
      %p240 = scmp.ne.s32.totalorder %s232, %s234
      %p241 = scmp.eq.s32.totalorder %s35, 1
      %p242 = por %p240, %p241
      %p243 = scmp.ne.s32.totalorder %s234, %s235
      %p244 = scmp.eq.s32.totalorder %s35, 0
      %p245 = por %p243, %p244
      %p246 = scmp.ne.s32.totalorder %s234, %s235
      %p247 = scmp.eq.s32.totalorder %s36, 1
      %p248 = por %p246, %p247
      %p250 = scmp.ne.s32.totalorder %s235, %s249
      %p251 = scmp.eq.s32.totalorder %s36, 0
      %p252 = por %p250, %p251
      %s254 = sadd.s32 %s253, 1
      %p257 = scmp.eq.s32.totalorder %s30, 1
      %p258 = scmp.ne.s32.totalorder %s253, %s255
      %p259 = scmp.eq.s32.totalorder %s30, 0
      %p260 = por %p258, %p259
      %p261 = scmp.ne.s32.totalorder %s253, %s255
      %p262 = scmp.eq.s32.totalorder %s35, 1
      %p263 = por %p261, %p262
      %p264 = scmp.ne.s32.totalorder %s255, %s256
      %p265 = scmp.eq.s32.totalorder %s35, 0
      %p266 = por %p264, %p265
      %p267 = scmp.ne.s32.totalorder %s255, %s256
      %p268 = scmp.eq.s32.totalorder %s36, 1
      %p269 = por %p267, %p268
      %p271 = scmp.ne.s32.totalorder %s256, %s270
      %p272 = scmp.eq.s32.totalorder %s36, 0
      %p273 = por %p271, %p272
      %s275 = sadd.s32 %s274, 1
      %p278 = scmp.eq.s32.totalorder %s30, 1
      %p279 = scmp.ne.s32.totalorder %s274, %s276
      %p280 = scmp.eq.s32.totalorder %s30, 0
      %p281 = por %p279, %p280
      %p282 = scmp.ne.s32.totalorder %s274, %s276
      %p283 = scmp.eq.s32.totalorder %s35, 1
      %p284 = por %p282, %p283
      %p285 = scmp.ne.s32.totalorder %s276, %s277
      %p286 = scmp.eq.s32.totalorder %s35, 0
      %p287 = por %p285, %p286
      %p288 = scmp.ne.s32.totalorder %s276, %s277
      %p289 = scmp.eq.s32.totalorder %s36, 1
      %p290 = por %p288, %p289
      %p292 = scmp.ne.s32.totalorder %s277, %s291
      %p293 = scmp.eq.s32.totalorder %s36, 0
      %p294 = por %p292, %p293
      %s296 = sadd.s32 %s295, 1
      %p299 = scmp.eq.s32.totalorder %s30, 1
      %p300 = scmp.ne.s32.totalorder %s295, %s297
      %p301 = scmp.eq.s32.totalorder %s30, 0
      %p302 = por %p300, %p301
      %p303 = scmp.ne.s32.totalorder %s295, %s297
      %p304 = scmp.eq.s32.totalorder %s35, 1
      %p305 = por %p303, %p304
      %p306 = scmp.ne.s32.totalorder %s297, %s298
      %p307 = scmp.eq.s32.totalorder %s35, 0
      %p308 = por %p306, %p307
      %p309 = scmp.ne.s32.totalorder %s297, %s298
      %p310 = scmp.eq.s32.totalorder %s36, 1
      %p311 = por %p309, %p310
      %p313 = scmp.ne.s32.totalorder %s298, %s312
      %p314 = scmp.eq.s32.totalorder %s36, 0
      %p315 = por %p313, %p314
      %s317 = sadd.s32 %s316, 1
      %p320 = scmp.eq.s32.totalorder %s30, 1
      %p321 = scmp.ne.s32.totalorder %s316, %s318
      %p322 = scmp.eq.s32.totalorder %s30, 0
      %p323 = por %p321, %p322
      %p324 = scmp.ne.s32.totalorder %s316, %s318
      %p325 = scmp.eq.s32.totalorder %s35, 1
      %p326 = por %p324, %p325
      %p327 = scmp.ne.s32.totalorder %s318, %s319
      %p328 = scmp.eq.s32.totalorder %s35, 0
      %p329 = por %p327, %p328
      %p330 = scmp.ne.s32.totalorder %s318, %s319
      %p331 = scmp.eq.s32.totalorder %s36, 1
      %p332 = por %p330, %p331
      %p334 = scmp.ne.s32.totalorder %s319, %s333
      %p335 = scmp.eq.s32.totalorder %s36, 0
      %p336 = por %p334, %p335
      %s337 = ssub.s32 %s30, %s37
      %p338 = scmp.eq.s32.totalorder %s337, 0
      %s340 = sadd.s32 %s339, 1
      %s341 = scalar_select %p338, %s339, %s340
      %p344 = pneg %p338
      %p345 = scmp.eq.s32.totalorder %s30, 1
      %p346 = por %p344, %p345
      %p347 = scmp.ne.s32.totalorder %s339, %s342
      %p348 = scmp.eq.s32.totalorder %s30, 0
      %p349 = por %p347, %p348
      %p350 = scmp.ne.s32.totalorder %s339, %s342
      %p351 = scmp.eq.s32.totalorder %s35, 1
      %p352 = por %p350, %p351
      %p353 = scmp.ne.s32.totalorder %s342, %s343
      %p354 = scmp.eq.s32.totalorder %s35, 0
      %p355 = por %p353, %p354
      %p356 = scmp.ne.s32.totalorder %s342, %s343
      %p357 = scmp.eq.s32.totalorder %s36, 1
      %p358 = por %p356, %p357
      %p360 = scmp.ne.s32.totalorder %s343, %s359
      %p361 = scmp.eq.s32.totalorder %s36, 0
      %p362 = por %p360, %p361
      %p363 = scmp.le.s32.totalorder 1, %s30
      %p364 = scmp.lt.s32.totalorder %s30, 3
      %p365 = pnand %p363, %p364
      %p366 = pneg %p365
      // Predicated region
      $region9: #{tpu_custom_call.1} parent=5 // pred_check
        _
      $region10: #{tpu_custom_call.1} parent=5 // pred_check_branch
        %368 = sbr.rel (%p365) target = $region12
      $region11: #{tpu_custom_call.1} parent=5 // pred_region
        %s369 = ssub.s32 %s30, 1
        // Predicated region
        $region13: #{tpu_custom_call.1} parent=11 // pred_check
          %p370 = pneg %p77
        $region14: #{tpu_custom_call.1} parent=11 // pred_check_branch
          %372 = sbr.rel (%p370) target = $region16
        $region15: #{tpu_custom_call.1} parent=11 // pred_region
          %s374 = ssub.s32 16, 16
          %375 = vsyncadd [#allocation6], %s374
          %s377 = sshll.u32 [#allocation5], 4
          %s378 = int_to_ptr.vmem [resolvable:$true] %s377
          %380 = dma.hbm_to_vmem [thread:$0]  %s1, 16, %s378, [#allocation6]
        $region16: #{tpu_custom_call.1} parent=11 // pred_fallthru
          _
        // Predicated region
        $region17: #{tpu_custom_call.1} parent=11 // pred_check
          %p381 = pneg %p98
        $region18: #{tpu_custom_call.1} parent=11 // pred_check_branch
          %383 = sbr.rel (%p381) target = $region20
        $region19: #{tpu_custom_call.1} parent=11 // pred_region
          %s385 = ssub.s32 16, 16
          %386 = vsyncadd [#allocation6], %s385
          %s388 = sshll.u32 [#allocation7], 4
          %s389 = int_to_ptr.vmem [resolvable:$true] %s388
          %391 = dma.hbm_to_vmem [thread:$0]  %s2, 16, %s389, [#allocation6]
        $region20: #{tpu_custom_call.1} parent=11 // pred_fallthru
          _
        // Predicated region
        $region21: #{tpu_custom_call.1} parent=11 // pred_check
          %p392 = pneg %p119
        $region22: #{tpu_custom_call.1} parent=11 // pred_check_branch
          %394 = sbr.rel (%p392) target = $region24
        $region23: #{tpu_custom_call.1} parent=11 // pred_region
          %s396 = ssub.s32 16, 16
          %397 = vsyncadd [#allocation9], %s396
          %s399 = sshll.u32 [#allocation8], 4
          %s400 = int_to_ptr.vmem [resolvable:$true] %s399
          %402 = dma.hbm_to_vmem [thread:$0]  %s3, 16, %s400, [#allocation9]
        $region24: #{tpu_custom_call.1} parent=11 // pred_fallthru
          _
        // Predicated region
        $region25: #{tpu_custom_call.1} parent=11 // pred_check
          %p403 = pneg %p140
        $region26: #{tpu_custom_call.1} parent=11 // pred_check_branch
          %405 = sbr.rel (%p403) target = $region28
        $region27: #{tpu_custom_call.1} parent=11 // pred_region
          _
        $region28: #{tpu_custom_call.1} parent=11 // pred_fallthru
          _
        // Predicated region
        $region29: #{tpu_custom_call.1} parent=11 // pred_check
          %p406 = pneg %p161
        $region30: #{tpu_custom_call.1} parent=11 // pred_check_branch
          %408 = sbr.rel (%p406) target = $region32
        $region31: #{tpu_custom_call.1} parent=11 // pred_region
          %s410 = ssub.s32 6144, 6144
          %411 = vsyncadd [#allocation9], %s410
          %s412 = sshll.u32 [#allocation10], 4
          %s413 = int_to_ptr.vmem [resolvable:$true] %s412
          %418 = dma.hbm_to_vmem [thread:$0]  %s5, 6144, %s413, [#allocation9], 384, 384, 24
        $region32: #{tpu_custom_call.1} parent=11 // pred_fallthru
          _
        // Predicated region
        $region33: #{tpu_custom_call.1} parent=11 // pred_check
          %p419 = pneg %p182
        $region34: #{tpu_custom_call.1} parent=11 // pred_check_branch
          %421 = sbr.rel (%p419) target = $region36
        $region35: #{tpu_custom_call.1} parent=11 // pred_region
          _
        $region36: #{tpu_custom_call.1} parent=11 // pred_fallthru
          _
        // Predicated region
        $region37: #{tpu_custom_call.1} parent=11 // pred_check
          %p422 = pneg %p203
        $region38: #{tpu_custom_call.1} parent=11 // pred_check_branch
          %424 = sbr.rel (%p422) target = $region40
        $region39: #{tpu_custom_call.1} parent=11 // pred_region
          %s426 = ssub.s32 2048, 2048
          %427 = vsyncadd [#allocation12], %s426
          %s428 = sshll.u32 [#allocation11], 4
          %s429 = int_to_ptr.vmem [resolvable:$true] %s428
          %434 = dma.hbm_to_vmem [thread:$0]  %s7, 2048, %s429, [#allocation12], 128, 128, 8
        $region40: #{tpu_custom_call.1} parent=11 // pred_fallthru
          _
        // Predicated region
        $region41: #{tpu_custom_call.1} parent=11 // pred_check
          %p435 = pneg %p224
        $region42: #{tpu_custom_call.1} parent=11 // pred_check_branch
          %437 = sbr.rel (%p435) target = $region44
        $region43: #{tpu_custom_call.1} parent=11 // pred_region
          %s439 = ssub.s32 2048, 2048
          %440 = vsyncadd [#allocation12], %s439
          %s441 = sshll.u32 [#allocation13], 4
          %s442 = int_to_ptr.vmem [resolvable:$true] %s441
          %447 = dma.hbm_to_vmem [thread:$0]  %s8, 2048, %s442, [#allocation12], 128, 128, 8
        $region44: #{tpu_custom_call.1} parent=11 // pred_fallthru
          _
        // Predicated region
        $region45: #{tpu_custom_call.1} parent=11 // pred_check
          %p448 = pneg %p245
        $region46: #{tpu_custom_call.1} parent=11 // pred_check_branch
          %450 = sbr.rel (%p448) target = $region48
        $region47: #{tpu_custom_call.1} parent=11 // pred_region
          _
        $region48: #{tpu_custom_call.1} parent=11 // pred_fallthru
          _
        // Predicated region
        $region49: #{tpu_custom_call.1} parent=11 // pred_check
          %p451 = pneg %p266
        $region50: #{tpu_custom_call.1} parent=11 // pred_check_branch
          %453 = sbr.rel (%p451) target = $region52
        $region51: #{tpu_custom_call.1} parent=11 // pred_region
          %s455 = ssub.s32 4096, 4096
          %456 = vsyncadd [#allocation15], %s455
          %s457 = sshll.u32 [#allocation14], 4
          %s458 = int_to_ptr.vmem [resolvable:$true] %s457
          %463 = dma.hbm_to_vmem [thread:$0]  %s10, 4096, %s458, [#allocation15], 256, 256, 16
        $region52: #{tpu_custom_call.1} parent=11 // pred_fallthru
          _
        // Predicated region
        $region53: #{tpu_custom_call.1} parent=11 // pred_check
          %p464 = pneg %p287
        $region54: #{tpu_custom_call.1} parent=11 // pred_check_branch
          %466 = sbr.rel (%p464) target = $region56
        $region55: #{tpu_custom_call.1} parent=11 // pred_region
          _
        $region56: #{tpu_custom_call.1} parent=11 // pred_fallthru
          _
        // Predicated region
        $region57: #{tpu_custom_call.1} parent=11 // pred_check
          %p467 = pneg %p308
        $region58: #{tpu_custom_call.1} parent=11 // pred_check_branch
          %469 = sbr.rel (%p467) target = $region60
        $region59: #{tpu_custom_call.1} parent=11 // pred_region
          %s471 = ssub.s32 4096, 4096
          %472 = vsyncadd [#allocation15], %s471
          %s473 = sshll.u32 [#allocation16], 4
          %s474 = int_to_ptr.vmem [resolvable:$true] %s473
          %479 = dma.hbm_to_vmem [thread:$0]  %s12, 4096, %s474, [#allocation15], 128, 128, 8
        $region60: #{tpu_custom_call.1} parent=11 // pred_fallthru
          _
        // Predicated region
        $region61: #{tpu_custom_call.1} parent=11 // pred_check
          %p480 = pneg %p329
        $region62: #{tpu_custom_call.1} parent=11 // pred_check_branch
          %482 = sbr.rel (%p480) target = $region64
        $region63: #{tpu_custom_call.1} parent=11 // pred_region
          _
        $region64: #{tpu_custom_call.1} parent=11 // pred_fallthru
          _
      $region12: #{tpu_custom_call.1} parent=5 // pred_fallthru
        _
      %p483 = scmp.lt.s32.totalorder %s30, 2
      // Predicated region
      $region65: #{tpu_custom_call.1} parent=5 // pred_check
        %p484 = pneg %p483
      $region66: #{tpu_custom_call.1} parent=5 // pred_check_branch
        %486 = sbr.rel (%p484) target = $region68
      $region67: #{tpu_custom_call.1} parent=5 // pred_region
        // Predicated region
        $region69: #{tpu_custom_call.1} parent=67 // pred_check
          %p487 = pneg %p50
        $region70: #{tpu_custom_call.1} parent=67 // pred_check_branch
          %489 = sbr.rel (%p487) target = $region72
        $region71: #{tpu_custom_call.1} parent=67 // pred_region
          %s490 = sand.u32 %s40, 1
          %s491 = scalar_lea.sflag [#allocation3], %s490
          %s492 = sand.u32 %s40, 1
          %s493 = smul.addr %s492, 8
          %s494 = scalar_lea.vmem [#allocation2], %s493
          %s496 = ssub.s32 128, 128
          %497 = vsyncadd %s491, %s496
          %s498 = smul.addr %s30, 128
          %s499 = scalar_lea.hbm %s0, %s498
          %s501 = sshll.u32 %s494, 4
          %s502 = int_to_ptr.vmem [resolvable:$true] %s501
          %504 = dma.hbm_to_vmem [thread:$0]  %s499, 128, %s502, %s491
        $region72: #{tpu_custom_call.1} parent=67 // pred_fallthru
          _
      $region68: #{tpu_custom_call.1} parent=5 // pred_fallthru
        _
      %p505 = scmp.le.s32.totalorder 1, %s30
      %p506 = scmp.lt.s32.totalorder %s30, 3
      %p507 = pnand %p505, %p506
      %p508 = pneg %p507
      // Predicated region
      $region73: #{tpu_custom_call.1} parent=5 // pred_check
        _
      $region74: #{tpu_custom_call.1} parent=5 // pred_check_branch
        %510 = sbr.rel (%p507) target = $region76
      $region75: #{tpu_custom_call.1} parent=5 // pred_region
        %s511 = ssub.s32 %s30, 1
        %s512 = sand.u32 %s43, 1
        %s513 = scalar_lea.sflag [#allocation3], %s512
        %s514 = sand.u32 %s43, 1
        %s515 = smul.addr %s514, 8
        %s516 = scalar_lea.vmem [#allocation2], %s515
        // Predicated region
        $region77: #{tpu_custom_call.1} parent=75 // pred_check
          %p517 = pneg %p56
        $region78: #{tpu_custom_call.1} parent=75 // pred_check_branch
          %519 = sbr.rel (%p517) target = $region80
        $region79: #{tpu_custom_call.1} parent=75 // pred_region
          %520 = dma.done %s513, 128
        $region80: #{tpu_custom_call.1} parent=75 // pred_fallthru
          _
        // Predicated region
        $region81: #{tpu_custom_call.1} parent=75 // pred_check
          %p521 = pneg %p77
        $region82: #{tpu_custom_call.1} parent=75 // pred_check_branch
          %523 = sbr.rel (%p521) target = $region84
        $region83: #{tpu_custom_call.1} parent=75 // pred_region
          %524 = dma.done [#allocation6], 16
        $region84: #{tpu_custom_call.1} parent=75 // pred_fallthru
          _
        // Predicated region
        $region85: #{tpu_custom_call.1} parent=75 // pred_check
          %p525 = pneg %p98
        $region86: #{tpu_custom_call.1} parent=75 // pred_check_branch
          %527 = sbr.rel (%p525) target = $region88
        $region87: #{tpu_custom_call.1} parent=75 // pred_region
          %528 = dma.done [#allocation6], 16
        $region88: #{tpu_custom_call.1} parent=75 // pred_fallthru
          _
        // Predicated region
        $region89: #{tpu_custom_call.1} parent=75 // pred_check
          %p529 = pneg %p119
        $region90: #{tpu_custom_call.1} parent=75 // pred_check_branch
          %531 = sbr.rel (%p529) target = $region92
        $region91: #{tpu_custom_call.1} parent=75 // pred_region
          %532 = dma.done [#allocation9], 16
        $region92: #{tpu_custom_call.1} parent=75 // pred_fallthru
          _
        // Predicated region
        $region93: #{tpu_custom_call.1} parent=75 // pred_check
          %p533 = pneg %p161
        $region94: #{tpu_custom_call.1} parent=75 // pred_check_branch
          %535 = sbr.rel (%p533) target = $region96
        $region95: #{tpu_custom_call.1} parent=75 // pred_region
          %536 = dma.done [#allocation9], 6144
        $region96: #{tpu_custom_call.1} parent=75 // pred_fallthru
          _
        // Predicated region
        $region97: #{tpu_custom_call.1} parent=75 // pred_check
          %p537 = pneg %p203
        $region98: #{tpu_custom_call.1} parent=75 // pred_check_branch
          %539 = sbr.rel (%p537) target = $region100
        $region99: #{tpu_custom_call.1} parent=75 // pred_region
          %540 = dma.done [#allocation12], 2048
        $region100: #{tpu_custom_call.1} parent=75 // pred_fallthru
          _
        // Predicated region
        $region101: #{tpu_custom_call.1} parent=75 // pred_check
          %p541 = pneg %p224
        $region102: #{tpu_custom_call.1} parent=75 // pred_check_branch
          %543 = sbr.rel (%p541) target = $region104
        $region103: #{tpu_custom_call.1} parent=75 // pred_region
          %544 = dma.done [#allocation12], 2048
        $region104: #{tpu_custom_call.1} parent=75 // pred_fallthru
          _
        // Predicated region
        $region105: #{tpu_custom_call.1} parent=75 // pred_check
          %p545 = pneg %p266
        $region106: #{tpu_custom_call.1} parent=75 // pred_check_branch
          %547 = sbr.rel (%p545) target = $region108
        $region107: #{tpu_custom_call.1} parent=75 // pred_region
          %548 = dma.done [#allocation15], 4096
        $region108: #{tpu_custom_call.1} parent=75 // pred_fallthru
          _
        // Predicated region
        $region109: #{tpu_custom_call.1} parent=75 // pred_check
          %p549 = pneg %p308
        $region110: #{tpu_custom_call.1} parent=75 // pred_check_branch
          %551 = sbr.rel (%p549) target = $region112
        $region111: #{tpu_custom_call.1} parent=75 // pred_region
          %552 = dma.done [#allocation15], 4096
        $region112: #{tpu_custom_call.1} parent=75 // pred_fallthru
          _
        %s553 = sand.u32 %s43, 1
        %s554 = scalar_lea.sflag [#allocation3], %s553
        %s555 = sand.u32 %s43, 1
        %s556 = smul.addr %s555, 8
        %s557 = scalar_lea.vmem [#allocation2], %s556
        %p558 = pneg %p56
        %p559 = pneg %p53
        %p560 = pneg %p77
        %p561 = pneg %p74
        %p562 = pneg %p98
        %p563 = pneg %p95
        %p564 = pneg %p119
        %p565 = pneg %p116
        %p566 = pneg %p140
        %p567 = pneg %p137
        %p568 = pneg %p161
        %p569 = pneg %p158
        %p570 = pneg %p182
        %p571 = pneg %p179
        %p572 = pneg %p203
        %p573 = pneg %p200
        %p574 = pneg %p224
        %p575 = pneg %p221
        %p576 = pneg %p245
        %p577 = pneg %p242
        %p578 = pneg %p266
        %p579 = pneg %p263
        %p580 = pneg %p287
        %p581 = pneg %p284
        %p582 = pneg %p308
        %p583 = pneg %p305
        %p584 = pneg %p329
        %p585 = pneg %p326
        %p586 = pneg %p355
        %p587 = pneg %p352
        %s588 = sand.u32 %s342, 1
        %s589 = scalar_lea.sflag [#allocation4], %s588
        %s590 = sand.u32 %s342, 1
        %s591 = smul.addr %s590, 8
        %s592 = scalar_lea.vmem [#allocation17], %s591
        %v593 = vld [vmem:[%s516] sm:$0xff]
        %v594 = vld [vmem:[#allocation5] sm:$0x1]
        %v595 = vld [vmem:[#allocation7] sm:$0x1]
        %596 = vadd.xlane.f32.xlu0 %v593
        %v597 = vpop.xlane.xlu0 %596
        %v598 = vrcp.pop 128.0
        %v599 = vmul.f32 %v597, %v598
        %v600 = vsub.f32 %v593, %v599
        %v601 = vmul.f32 %v600, %v600
        %602 = vadd.xlane.f32.xlu0 %v601
        %v603 = vpop.xlane.xlu0 %602
        %v604 = vmul.f32 %v603, 0.007874016
        %v605 = vrsqrt.pop %v604
        %v606 = vmul.f32 %v604, %v605
        %vm607 = vcmp.eq.f32.partialorder %v604, inf
        %v608 = vsel %vm607, %v604, %v606
        %vm609 = vcmp.eq.f32.partialorder %v604, 0.0
        %v610 = vand.u32 %v604, 2147483648
        %v611 = vsel %vm609, %v610, %v608
        %v612 = vadd.f32 %v611, 1e-06
        %v613 = vrcp.pop %v612
        %v615 = vlaneseq
        %v616 = vshrl.u32 %v615, 7
        %v617 = vsub.s32 0, %v616
        %v618 = vrot.slane %v594, %v617
        %v620 = vmul.f32 %v618, %v600
        %v621 = vmul.f32 %v620, %v613
        %v623 = vlaneseq
        %v624 = vshrl.u32 %v623, 7
        %v625 = vsub.s32 0, %v624
        %v626 = vrot.slane %v595, %v625
        %v628 = vadd.f32 %v621, %v626
        %v629 = vld [vmem:[#allocation10] sm:$0xff]
        %v630 = vld [vmem:[#allocation10 + $0x8] sm:$0xff]
        %v631 = vld [vmem:[#allocation10 + $0x10] sm:$0xff]
        %v632 = vld [vmem:[#allocation10 + $0x18] sm:$0xff]
        %v633 = vld [vmem:[#allocation10 + $0x20] sm:$0xff]
        %v634 = vld [vmem:[#allocation10 + $0x28] sm:$0xff]
        %v635 = vld [vmem:[#allocation10 + $0x30] sm:$0xff]
        %v636 = vld [vmem:[#allocation10 + $0x38] sm:$0xff]
        %v637 = vld [vmem:[#allocation10 + $0x40] sm:$0xff]
        %v638 = vld [vmem:[#allocation10 + $0x48] sm:$0xff]
        %v639 = vld [vmem:[#allocation10 + $0x50] sm:$0xff]
        %v640 = vld [vmem:[#allocation10 + $0x58] sm:$0xff]
        %v641 = vld [vmem:[#allocation10 + $0x60] sm:$0xff]
        %v642 = vld [vmem:[#allocation10 + $0x68] sm:$0xff]
        %v643 = vld [vmem:[#allocation10 + $0x70] sm:$0xff]
        %v644 = vld [vmem:[#allocation10 + $0x78] sm:$0xff]
        %v645 = vld [vmem:[#allocation10 + $0x80] sm:$0xff]
        %v646 = vld [vmem:[#allocation10 + $0x88] sm:$0xff]
        %v647 = vld [vmem:[#allocation10 + $0x90] sm:$0xff]
        %v648 = vld [vmem:[#allocation10 + $0x98] sm:$0xff]
        %v649 = vld [vmem:[#allocation10 + $0xa0] sm:$0xff]
        %v650 = vld [vmem:[#allocation10 + $0xa8] sm:$0xff]
        %v651 = vld [vmem:[#allocation10 + $0xb0] sm:$0xff]
        %v652 = vld [vmem:[#allocation10 + $0xb8] sm:$0xff]
        %v653 = vld [vmem:[#allocation10 + $0xc0] sm:$0xff]
        %v654 = vld [vmem:[#allocation10 + $0xc8] sm:$0xff]
        %v655 = vld [vmem:[#allocation10 + $0xd0] sm:$0xff]
        %v656 = vld [vmem:[#allocation10 + $0xd8] sm:$0xff]
        %v657 = vld [vmem:[#allocation10 + $0xe0] sm:$0xff]
        %v658 = vld [vmem:[#allocation10 + $0xe8] sm:$0xff]
        %v659 = vld [vmem:[#allocation10 + $0xf0] sm:$0xff]
        %v660 = vld [vmem:[#allocation10 + $0xf8] sm:$0xff]
        %v661 = vld [vmem:[#allocation10 + $0x100] sm:$0xff]
        %v662 = vld [vmem:[#allocation10 + $0x108] sm:$0xff]
        %v663 = vld [vmem:[#allocation10 + $0x110] sm:$0xff]
        %v664 = vld [vmem:[#allocation10 + $0x118] sm:$0xff]
        %v665 = vld [vmem:[#allocation10 + $0x120] sm:$0xff]
        %v666 = vld [vmem:[#allocation10 + $0x128] sm:$0xff]
        %v667 = vld [vmem:[#allocation10 + $0x130] sm:$0xff]
        %v668 = vld [vmem:[#allocation10 + $0x138] sm:$0xff]
        %v669 = vld [vmem:[#allocation10 + $0x140] sm:$0xff]
        %v670 = vld [vmem:[#allocation10 + $0x148] sm:$0xff]
        %v671 = vld [vmem:[#allocation10 + $0x150] sm:$0xff]
        %v672 = vld [vmem:[#allocation10 + $0x158] sm:$0xff]
        %v673 = vld [vmem:[#allocation10 + $0x160] sm:$0xff]
        %v674 = vld [vmem:[#allocation10 + $0x168] sm:$0xff]
        %v675 = vld [vmem:[#allocation10 + $0x170] sm:$0xff]
        %v676 = vld [vmem:[#allocation10 + $0x178] sm:$0xff]
        %v677 = vld [vmem:[%s6] sm:$0x7]
        %v679 = vlaneseq
        %v680 = vshrl.u32 %v679, 7
        %v681 = vsub.s32 0, %v680
        %v682 = vrot.slane %v677, %v681
        %v683 = vlaneseq
        %v684 = vshrl.u32 %v683, 7
        %v685 = vsub.s32 1, %v684
        %v686 = vrot.slane %v677, %v685
        %v687 = vlaneseq
        %v688 = vshrl.u32 %v687, 7
        %v689 = vsub.s32 2, %v688
        %v690 = vrot.slane %v677, %v689
        %694 = vmatprep.subr.mxu0 %v675
        %695 = vmatpush1.msra.mxu0 %v674
        %696 = vmatprep.subr.mxu0 %v672
        %697 = vmatpush1.msra.mxu0 %v671
        %698 = vmatprep.subr.mxu0 %v669
        %699 = vmatpush1.msra.mxu0 %v668
        %700 = vmatprep.subr.mxu0 %v666
        %701 = vmatpush1.msra.mxu0 %v665
        %702 = vmatprep.subr.mxu0 %v663
        %703 = vmatpush1.msra.mxu0 %v662
        %704 = vmatprep.subr.mxu0 %v660
        %705 = vmatpush1.msra.mxu0 %v659
        %706 = vmatprep.subr.mxu0 %v657
        %707 = vmatpush1.msra.mxu0 %v656
        %708 = vmatprep.subr.mxu0 %v654
        %709 = vmatpush1.msra.mxu0 %v653
        %710 = vmatprep.subr.mxu0 %v651
        %711 = vmatpush1.msra.mxu0 %v650
        %712 = vmatprep.subr.mxu0 %v648
        %713 = vmatpush1.msra.mxu0 %v647
        %714 = vmatprep.subr.mxu0 %v645
        %715 = vmatpush1.msra.mxu0 %v644
        %716 = vmatprep.subr.mxu0 %v642
        %717 = vmatpush1.msra.mxu0 %v641
        %718 = vmatprep.subr.mxu0 %v639
        %719 = vmatpush1.msra.mxu0 %v638
        %720 = vmatprep.subr.mxu0 %v636
        %721 = vmatpush1.msra.mxu0 %v635
        %722 = vmatprep.subr.mxu0 %v633
        %723 = vmatpush1.msra.mxu0 %v632
        %724 = vmatprep.subr.mxu0 %v630
        %725 = vmatpush1.msra.mxu0 %v629
        %726 = vmatprep.subr.mxu0 0.0
        %727 = vmatpush2.msra.mxu0 0.0
        %728 = vmatprep.subr.mxu0 0.0
        %729 = vmatpush2.msra.mxu0 0.0
        %730 = vmatprep.subr.mxu0 0.0
        %731 = vmatpush2.msra.mxu0 0.0
        %732 = vmatprep.subr.mxu0 0.0
        %733 = vmatpush2.msra.mxu0 0.0
        %734 = vmatprep.subr.mxu0 0.0
        %735 = vmatpush2.msra.mxu0 0.0
        %736 = vmatprep.subr.mxu0 0.0
        %737 = vmatpush2.msra.mxu0 0.0
        %738 = vmatprep.subr.mxu0 0.0
        %739 = vmatpush2.msra.mxu0 0.0
        %740 = vmatprep.subr.mxu0 0.0
        %741 = vmatpush2.msra.mxu0 0.0
        %742 = vmatprep.subr.mxu0 0.0
        %743 = vmatpush2.msra.mxu0 0.0
        %744 = vmatprep.subr.mxu0 0.0
        %745 = vmatpush2.msra.mxu0 0.0
        %746 = vmatprep.subr.mxu0 0.0
        %747 = vmatpush2.msra.mxu0 0.0
        %748 = vmatprep.subr.mxu0 0.0
        %749 = vmatpush2.msra.mxu0 0.0
        %750 = vmatprep.subr.mxu0 0.0
        %751 = vmatpush2.msra.mxu0 0.0
        %752 = vmatprep.subr.mxu0 0.0
        %753 = vmatpush2.msra.mxu0 0.0
        %754 = vmatprep.subr.mxu0 0.0
        %755 = vmatpush2.msra.mxu0 0.0
        %756 = vmatprep.subr.mxu0 0.0
        %757 = vmatpush2.msra.mxu0 0.0
        %758 = vmatprep.mubr.f32.mxu0 0.0
        %759 = vmatmul.mubr.f32.gmra.mxu0 %v628
        %v760 = vpop.f32.mrf.mxu0
        %v761 = vadd.f32 %v682, %v760
        %v762 = vpop.f32.mrf.mxu0
        %v763 = vadd.f32 %v686, %v762
        %764 = vdwg.mxu0
        %765 = vmatprep.subr.mxu0 0.0
        %766 = vmatpush1.msra.mxu0 %v676
        %767 = vmatprep.subr.mxu0 0.0
        %768 = vmatpush1.msra.mxu0 %v673
        %769 = vmatprep.subr.mxu0 0.0
        %770 = vmatpush1.msra.mxu0 %v670
        %771 = vmatprep.subr.mxu0 0.0
        %772 = vmatpush1.msra.mxu0 %v667
        %773 = vmatprep.subr.mxu0 0.0
        %774 = vmatpush1.msra.mxu0 %v664
        %775 = vmatprep.subr.mxu0 0.0
        %776 = vmatpush1.msra.mxu0 %v661
        %777 = vmatprep.subr.mxu0 0.0
        %778 = vmatpush1.msra.mxu0 %v658
        %779 = vmatprep.subr.mxu0 0.0
        %780 = vmatpush1.msra.mxu0 %v655
        %781 = vmatprep.subr.mxu0 0.0
        %782 = vmatpush1.msra.mxu0 %v652
        %783 = vmatprep.subr.mxu0 0.0
        %784 = vmatpush1.msra.mxu0 %v649
        %785 = vmatprep.subr.mxu0 0.0
        %786 = vmatpush1.msra.mxu0 %v646
        %787 = vmatprep.subr.mxu0 0.0
        %788 = vmatpush1.msra.mxu0 %v643
        %789 = vmatprep.subr.mxu0 0.0
        %790 = vmatpush1.msra.mxu0 %v640
        %791 = vmatprep.subr.mxu0 0.0
        %792 = vmatpush1.msra.mxu0 %v637
        %793 = vmatprep.subr.mxu0 0.0
        %794 = vmatpush1.msra.mxu0 %v634
        %795 = vmatprep.subr.mxu0 0.0
        %796 = vmatpush1.msra.mxu0 %v631
        %797 = vmatprep.subr.mxu0 0.0
        %798 = vmatpush2.msra.mxu0 0.0
        %799 = vmatprep.subr.mxu0 0.0
        %800 = vmatpush2.msra.mxu0 0.0
        %801 = vmatprep.subr.mxu0 0.0
        %802 = vmatpush2.msra.mxu0 0.0
        %803 = vmatprep.subr.mxu0 0.0
        %804 = vmatpush2.msra.mxu0 0.0
        %805 = vmatprep.subr.mxu0 0.0
        %806 = vmatpush2.msra.mxu0 0.0
        %807 = vmatprep.subr.mxu0 0.0
        %808 = vmatpush2.msra.mxu0 0.0
        %809 = vmatprep.subr.mxu0 0.0
        %810 = vmatpush2.msra.mxu0 0.0
        %811 = vmatprep.subr.mxu0 0.0
        %812 = vmatpush2.msra.mxu0 0.0
        %813 = vmatprep.subr.mxu0 0.0
        %814 = vmatpush2.msra.mxu0 0.0
        %815 = vmatprep.subr.mxu0 0.0
        %816 = vmatpush2.msra.mxu0 0.0
        %817 = vmatprep.subr.mxu0 0.0
        %818 = vmatpush2.msra.mxu0 0.0
        %819 = vmatprep.subr.mxu0 0.0
        %820 = vmatpush2.msra.mxu0 0.0
        %821 = vmatprep.subr.mxu0 0.0
        %822 = vmatpush2.msra.mxu0 0.0
        %823 = vmatprep.subr.mxu0 0.0
        %824 = vmatpush2.msra.mxu0 0.0
        %825 = vmatprep.subr.mxu0 0.0
        %826 = vmatpush2.msra.mxu0 0.0
        %827 = vmatprep.subr.mxu0 0.0
        %828 = vmatpush2.msra.mxu0 0.0
        %829 = vmatprep.mubr.f32.mxu0 0.0
        %830 = vmatmul.mubr.f32.gmra.mxu0 %v628
        %v831 = vpop.f32.mrf.mxu0
        %v832 = vadd.f32 %v690, %v831
        %v833 = vpop.f32.mrf.mxu0
        %834 = vdwg.mxu0
        %835 = vxpose.xlu0.b32.start [1/16] %v763, 128
        %836 = vxpose.xlu0.b32.cont [2/16] 0.0, 128
        %837 = vxpose.xlu0.b32.cont [3/16] 0.0, 128
        %838 = vxpose.xlu0.b32.cont [4/16] 0.0, 128
        %839 = vxpose.xlu0.b32.cont [5/16] 0.0, 128
        %840 = vxpose.xlu0.b32.cont [6/16] 0.0, 128
        %841 = vxpose.xlu0.b32.cont [7/16] 0.0, 128
        %842 = vxpose.xlu0.b32.cont [8/16] 0.0, 128
        %843 = vxpose.xlu0.b32.cont [9/16] 0.0, 128
        %844 = vxpose.xlu0.b32.cont [10/16] 0.0, 128
        %845 = vxpose.xlu0.b32.cont [11/16] 0.0, 128
        %846 = vxpose.xlu0.b32.cont [12/16] 0.0, 128
        %847 = vxpose.xlu0.b32.cont [13/16] 0.0, 128
        %848 = vxpose.xlu0.b32.cont [14/16] 0.0, 128
        %849 = vxpose.xlu0.b32.cont [15/16] 0.0, 128
        %850 = vxpose.xlu0.b32.end [16/16] 0.0, 128
        %v851 = vpop.trf.xlu0
        %v852 = vpop.trf.xlu0
        %v853 = vpop.trf.xlu0
        %v854 = vpop.trf.xlu0
        %v855 = vpop.trf.xlu0
        %v856 = vpop.trf.xlu0
        %v857 = vpop.trf.xlu0
        %v858 = vpop.trf.xlu0
        %v859 = vpop.trf.xlu0
        %v860 = vpop.trf.xlu0
        %v861 = vpop.trf.xlu0
        %v862 = vpop.trf.xlu0
        %v863 = vpop.trf.xlu0
        %v864 = vpop.trf.xlu0
        %v865 = vpop.trf.xlu0
        %v866 = vpop.trf.xlu0
        %vm867 = vcmask 64512
        %v869 = vsel %vm867, %v851, 0
        %v872 = vsel %vm867, %v852, 0
        %v875 = vsel %vm867, %v853, 0
        %v878 = vsel %vm867, %v854, 0
        %v881 = vsel %vm867, %v855, 0
        %v884 = vsel %vm867, %v856, 0
        %v887 = vsel %vm867, %v857, 0
        %v890 = vsel %vm867, %v858, 0
        %v893 = vsel %vm867, %v859, 0
        %v896 = vsel %vm867, %v860, 0
        %v899 = vsel %vm867, %v861, 0
        %v902 = vsel %vm867, %v862, 0
        %v905 = vsel %vm867, %v863, 0
        %v908 = vsel %vm867, %v864, 0
        %v911 = vsel %vm867, %v865, 0
        %v914 = vsel %vm867, %v866, 0
        %916 = vmatprep.subr.mxu0 0.0
        %917 = vmatpush1.msra.mxu0 0.0
        %918 = vmatprep.subr.mxu0 0.0
        %919 = vmatpush1.msra.mxu0 0.0
        %920 = vmatprep.subr.mxu0 0.0
        %921 = vmatpush1.msra.mxu0 0.0
        %922 = vmatprep.subr.mxu0 0.0
        %923 = vmatpush1.msra.mxu0 0.0
        %924 = vmatprep.subr.mxu0 0.0
        %925 = vmatpush1.msra.mxu0 0.0
        %926 = vmatprep.subr.mxu0 0.0
        %927 = vmatpush1.msra.mxu0 0.0
        %928 = vmatprep.subr.mxu0 0.0
        %929 = vmatpush1.msra.mxu0 0.0
        %930 = vmatprep.subr.mxu0 0.0
        %931 = vmatpush1.msra.mxu0 0.0
        %932 = vmatprep.subr.mxu0 0.0
        %933 = vmatpush1.msra.mxu0 0.0
        %934 = vmatprep.subr.mxu0 0.0
        %935 = vmatpush1.msra.mxu0 0.0
        %936 = vmatprep.subr.mxu0 0.0
        %937 = vmatpush1.msra.mxu0 0.0
        %938 = vmatprep.subr.mxu0 0.0
        %939 = vmatpush1.msra.mxu0 0.0
        %940 = vmatprep.subr.mxu0 0.0
        %941 = vmatpush1.msra.mxu0 0.0
        %942 = vmatprep.subr.mxu0 0.0
        %943 = vmatpush1.msra.mxu0 0.0
        %944 = vmatprep.subr.mxu0 0.0
        %945 = vmatpush1.msra.mxu0 0.0
        %946 = vmatprep.subr.mxu0 0.0
        %947 = vmatpush1.msra.mxu0 %v832
        %948 = vmatprep.subr.mxu0 0.0
        %949 = vmatpush2.msra.mxu0 0.0
        %950 = vmatprep.subr.mxu0 0.0
        %951 = vmatpush2.msra.mxu0 0.0
        %952 = vmatprep.subr.mxu0 0.0
        %953 = vmatpush2.msra.mxu0 0.0
        %954 = vmatprep.subr.mxu0 0.0
        %955 = vmatpush2.msra.mxu0 0.0
        %956 = vmatprep.subr.mxu0 0.0
        %957 = vmatpush2.msra.mxu0 0.0
        %958 = vmatprep.subr.mxu0 0.0
        %959 = vmatpush2.msra.mxu0 0.0
        %960 = vmatprep.subr.mxu0 0.0
        %961 = vmatpush2.msra.mxu0 0.0
        %962 = vmatprep.subr.mxu0 0.0
        %963 = vmatpush2.msra.mxu0 0.0
        %964 = vmatprep.subr.mxu0 0.0
        %965 = vmatpush2.msra.mxu0 0.0
        %966 = vmatprep.subr.mxu0 0.0
        %967 = vmatpush2.msra.mxu0 0.0
        %968 = vmatprep.subr.mxu0 0.0
        %969 = vmatpush2.msra.mxu0 0.0
        %970 = vmatprep.subr.mxu0 0.0
        %971 = vmatpush2.msra.mxu0 0.0
        %972 = vmatprep.subr.mxu0 0.0
        %973 = vmatpush2.msra.mxu0 0.0
        %974 = vmatprep.subr.mxu0 0.0
        %975 = vmatpush2.msra.mxu0 0.0
        %976 = vmatprep.subr.mxu0 0.0
        %977 = vmatpush2.msra.mxu0 0.0
        %978 = vmatprep.subr.mxu0 0.0
        %979 = vmatpush2.msra.mxu0 0.0
        %980 = vmatprep.mubr.f32.mxu0 0.0
        %981 = vmatmul.mubr.f32.gmra.mxu0 %v869
        %v982 = vpop.f32.mrf.mxu0
        %v983 = vadd.f32 0.0, %v982
        %v984 = vpop.f32.mrf.mxu0
        %985 = vmatprep.mubr.f32.mxu0 0.0
        %986 = vmatmul.mubr.f32.gmra.mxu0 %v872
        %v987 = vpop.f32.mrf.mxu0
        %v988 = vadd.f32 0.0, %v987
        %v989 = vpop.f32.mrf.mxu0
        %990 = vmatprep.mubr.f32.mxu0 0.0
        %991 = vmatmul.mubr.f32.gmra.mxu0 %v875
        %v992 = vpop.f32.mrf.mxu0
        %v993 = vadd.f32 0.0, %v992
        %v994 = vpop.f32.mrf.mxu0
        %995 = vmatprep.mubr.f32.mxu0 0.0
        %996 = vmatmul.mubr.f32.gmra.mxu0 %v878
        %v997 = vpop.f32.mrf.mxu0
        %v998 = vadd.f32 0.0, %v997
        %v999 = vpop.f32.mrf.mxu0
        %1000 = vmatprep.mubr.f32.mxu0 0.0
        %1001 = vmatmul.mubr.f32.gmra.mxu0 %v881
        %v1002 = vpop.f32.mrf.mxu0
        %v1003 = vadd.f32 0.0, %v1002
        %v1004 = vpop.f32.mrf.mxu0
        %1005 = vmatprep.mubr.f32.mxu0 0.0
        %1006 = vmatmul.mubr.f32.gmra.mxu0 %v884
        %v1007 = vpop.f32.mrf.mxu0
        %v1008 = vadd.f32 0.0, %v1007
        %v1009 = vpop.f32.mrf.mxu0
        %1010 = vmatprep.mubr.f32.mxu0 0.0
        %1011 = vmatmul.mubr.f32.gmra.mxu0 %v887
        %v1012 = vpop.f32.mrf.mxu0
        %v1013 = vadd.f32 0.0, %v1012
        %v1014 = vpop.f32.mrf.mxu0
        %1015 = vmatprep.mubr.f32.mxu0 0.0
        %1016 = vmatmul.mubr.f32.gmra.mxu0 %v890
        %v1017 = vpop.f32.mrf.mxu0
        %v1018 = vadd.f32 0.0, %v1017
        %v1019 = vpop.f32.mrf.mxu0
        %1020 = vmatprep.mubr.f32.mxu0 0.0
        %1021 = vmatmul.mubr.f32.gmra.mxu0 %v893
        %v1022 = vpop.f32.mrf.mxu0
        %v1023 = vadd.f32 0.0, %v1022
        %v1024 = vpop.f32.mrf.mxu0
        %1025 = vmatprep.mubr.f32.mxu0 0.0
        %1026 = vmatmul.mubr.f32.gmra.mxu0 %v896
        %v1027 = vpop.f32.mrf.mxu0
        %v1028 = vadd.f32 0.0, %v1027
        %v1029 = vpop.f32.mrf.mxu0
        %1030 = vmatprep.mubr.f32.mxu0 0.0
        %1031 = vmatmul.mubr.f32.gmra.mxu0 %v899
        %v1032 = vpop.f32.mrf.mxu0
        %v1033 = vadd.f32 0.0, %v1032
        %v1034 = vpop.f32.mrf.mxu0
        %1035 = vmatprep.mubr.f32.mxu0 0.0
        %1036 = vmatmul.mubr.f32.gmra.mxu0 %v902
        %v1037 = vpop.f32.mrf.mxu0
        %v1038 = vadd.f32 0.0, %v1037
        %v1039 = vpop.f32.mrf.mxu0
        %1040 = vmatprep.mubr.f32.mxu0 0.0
        %1041 = vmatmul.mubr.f32.gmra.mxu0 %v905
        %v1042 = vpop.f32.mrf.mxu0
        %v1043 = vadd.f32 0.0, %v1042
        %v1044 = vpop.f32.mrf.mxu0
        %1045 = vmatprep.mubr.f32.mxu0 0.0
        %1046 = vmatmul.mubr.f32.gmra.mxu0 %v908
        %v1047 = vpop.f32.mrf.mxu0
        %v1048 = vadd.f32 0.0, %v1047
        %v1049 = vpop.f32.mrf.mxu0
        %1050 = vmatprep.mubr.f32.mxu0 0.0
        %1051 = vmatmul.mubr.f32.gmra.mxu0 %v911
        %v1052 = vpop.f32.mrf.mxu0
        %v1053 = vadd.f32 0.0, %v1052
        %v1054 = vpop.f32.mrf.mxu0
        %1055 = vmatprep.mubr.f32.mxu0 0.0
        %1056 = vmatmul.mubr.f32.gmra.mxu0 %v914
        %v1057 = vpop.f32.mrf.mxu0
        %v1058 = vadd.f32 0.0, %v1057
        %v1059 = vpop.f32.mrf.mxu0
        %1060 = vdwg.mxu0
        %v1061 = vld [vmem:[#allocation11] sm:$0xff]
        %v1062 = vld [vmem:[#allocation11 + $0x8] sm:$0xff]
        %v1063 = vld [vmem:[#allocation11 + $0x10] sm:$0xff]
        %v1064 = vld [vmem:[#allocation11 + $0x18] sm:$0xff]
        %v1065 = vld [vmem:[#allocation11 + $0x20] sm:$0xff]
        %v1066 = vld [vmem:[#allocation11 + $0x28] sm:$0xff]
        %v1067 = vld [vmem:[#allocation11 + $0x30] sm:$0xff]
        %v1068 = vld [vmem:[#allocation11 + $0x38] sm:$0xff]
        %v1069 = vld [vmem:[#allocation11 + $0x40] sm:$0xff]
        %v1070 = vld [vmem:[#allocation11 + $0x48] sm:$0xff]
        %v1071 = vld [vmem:[#allocation11 + $0x50] sm:$0xff]
        %v1072 = vld [vmem:[#allocation11 + $0x58] sm:$0xff]
        %v1073 = vld [vmem:[#allocation11 + $0x60] sm:$0xff]
        %v1074 = vld [vmem:[#allocation11 + $0x68] sm:$0xff]
        %v1075 = vld [vmem:[#allocation11 + $0x70] sm:$0xff]
        %v1076 = vld [vmem:[#allocation11 + $0x78] sm:$0xff]
        %v1077 = vmul.f32 %v983, %v1061
        %v1078 = vmul.f32 %v988, %v1062
        %v1079 = vmul.f32 %v993, %v1063
        %v1080 = vmul.f32 %v998, %v1064
        %v1081 = vmul.f32 %v1003, %v1065
        %v1082 = vmul.f32 %v1008, %v1066
        %v1083 = vmul.f32 %v1013, %v1067
        %v1084 = vmul.f32 %v1018, %v1068
        %v1085 = vmul.f32 %v1023, %v1069
        %v1086 = vmul.f32 %v1028, %v1070
        %v1087 = vmul.f32 %v1033, %v1071
        %v1088 = vmul.f32 %v1038, %v1072
        %v1089 = vmul.f32 %v1043, %v1073
        %v1090 = vmul.f32 %v1048, %v1074
        %v1091 = vmul.f32 %v1053, %v1075
        %v1092 = vmul.f32 %v1058, %v1076
        %1093 = vmatprep.subr.mxu0 0.0
        %1094 = vmatpush1.msra.mxu0 %v1092
        %1095 = vmatprep.subr.mxu0 0.0
        %1096 = vmatpush1.msra.mxu0 %v1091
        %1097 = vmatprep.subr.mxu0 0.0
        %1098 = vmatpush1.msra.mxu0 %v1090
        %1099 = vmatprep.subr.mxu0 0.0
        %1100 = vmatpush1.msra.mxu0 %v1089
        %1101 = vmatprep.subr.mxu0 0.0
        %1102 = vmatpush1.msra.mxu0 %v1088
        %1103 = vmatprep.subr.mxu0 0.0
        %1104 = vmatpush1.msra.mxu0 %v1087
        %1105 = vmatprep.subr.mxu0 0.0
        %1106 = vmatpush1.msra.mxu0 %v1086
        %1107 = vmatprep.subr.mxu0 0.0
        %1108 = vmatpush1.msra.mxu0 %v1085
        %1109 = vmatprep.subr.mxu0 0.0
        %1110 = vmatpush1.msra.mxu0 %v1084
        %1111 = vmatprep.subr.mxu0 0.0
        %1112 = vmatpush1.msra.mxu0 %v1083
        %1113 = vmatprep.subr.mxu0 0.0
        %1114 = vmatpush1.msra.mxu0 %v1082
        %1115 = vmatprep.subr.mxu0 0.0
        %1116 = vmatpush1.msra.mxu0 %v1081
        %1117 = vmatprep.subr.mxu0 0.0
        %1118 = vmatpush1.msra.mxu0 %v1080
        %1119 = vmatprep.subr.mxu0 0.0
        %1120 = vmatpush1.msra.mxu0 %v1079
        %1121 = vmatprep.subr.mxu0 0.0
        %1122 = vmatpush1.msra.mxu0 %v1078
        %1123 = vmatprep.subr.mxu0 0.0
        %1124 = vmatpush1.msra.mxu0 %v1077
        %1125 = vmatprep.subr.mxu0 0.0
        %1126 = vmatpush2.msra.mxu0 0.0
        %1127 = vmatprep.subr.mxu0 0.0
        %1128 = vmatpush2.msra.mxu0 0.0
        %1129 = vmatprep.subr.mxu0 0.0
        %1130 = vmatpush2.msra.mxu0 0.0
        %1131 = vmatprep.subr.mxu0 0.0
        %1132 = vmatpush2.msra.mxu0 0.0
        %1133 = vmatprep.subr.mxu0 0.0
        %1134 = vmatpush2.msra.mxu0 0.0
        %1135 = vmatprep.subr.mxu0 0.0
        %1136 = vmatpush2.msra.mxu0 0.0
        %1137 = vmatprep.subr.mxu0 0.0
        %1138 = vmatpush2.msra.mxu0 0.0
        %1139 = vmatprep.subr.mxu0 0.0
        %1140 = vmatpush2.msra.mxu0 0.0
        %1141 = vmatprep.subr.mxu0 0.0
        %1142 = vmatpush2.msra.mxu0 0.0
        %1143 = vmatprep.subr.mxu0 0.0
        %1144 = vmatpush2.msra.mxu0 0.0
        %1145 = vmatprep.subr.mxu0 0.0
        %1146 = vmatpush2.msra.mxu0 0.0
        %1147 = vmatprep.subr.mxu0 0.0
        %1148 = vmatpush2.msra.mxu0 0.0
        %1149 = vmatprep.subr.mxu0 0.0
        %1150 = vmatpush2.msra.mxu0 0.0
        %1151 = vmatprep.subr.mxu0 0.0
        %1152 = vmatpush2.msra.mxu0 0.0
        %1153 = vmatprep.subr.mxu0 0.0
        %1154 = vmatpush2.msra.mxu0 0.0
        %1155 = vmatprep.subr.mxu0 0.0
        %1156 = vmatpush2.msra.mxu0 0.0
        %1157 = vmatprep.mubr.f32.mxu0 0.0
        %1158 = vmatmul.mubr.f32.gmra.mxu0 %v761
        %v1159 = vpop.f32.mrf.mxu0
        %v1160 = vadd.f32 0.0, %v1159
        %v1161 = vpop.f32.mrf.mxu0
        %1162 = vdwg.mxu0
        %v1163 = vld [vmem:[#allocation13] sm:$0xff]
        %v1164 = vld [vmem:[#allocation13 + $0x8] sm:$0xff]
        %v1165 = vld [vmem:[#allocation13 + $0x10] sm:$0xff]
        %v1166 = vld [vmem:[#allocation13 + $0x18] sm:$0xff]
        %v1167 = vld [vmem:[#allocation13 + $0x20] sm:$0xff]
        %v1168 = vld [vmem:[#allocation13 + $0x28] sm:$0xff]
        %v1169 = vld [vmem:[#allocation13 + $0x30] sm:$0xff]
        %v1170 = vld [vmem:[#allocation13 + $0x38] sm:$0xff]
        %v1171 = vld [vmem:[#allocation13 + $0x40] sm:$0xff]
        %v1172 = vld [vmem:[#allocation13 + $0x48] sm:$0xff]
        %v1173 = vld [vmem:[#allocation13 + $0x50] sm:$0xff]
        %v1174 = vld [vmem:[#allocation13 + $0x58] sm:$0xff]
        %v1175 = vld [vmem:[#allocation13 + $0x60] sm:$0xff]
        %v1176 = vld [vmem:[#allocation13 + $0x68] sm:$0xff]
        %v1177 = vld [vmem:[#allocation13 + $0x70] sm:$0xff]
        %v1178 = vld [vmem:[#allocation13 + $0x78] sm:$0xff]
        %v1179 = vld [vmem:[%s9] sm:$0x1]
        %v1181 = vlaneseq
        %v1182 = vshrl.u32 %v1181, 7
        %v1183 = vsub.s32 0, %v1182
        %v1184 = vrot.slane %v1179, %v1183
        %1186 = vmatprep.subr.mxu0 0.0
        %1187 = vmatpush1.msra.mxu0 %v1178
        %1188 = vmatprep.subr.mxu0 0.0
        %1189 = vmatpush1.msra.mxu0 %v1177
        %1190 = vmatprep.subr.mxu0 0.0
        %1191 = vmatpush1.msra.mxu0 %v1176
        %1192 = vmatprep.subr.mxu0 0.0
        %1193 = vmatpush1.msra.mxu0 %v1175
        %1194 = vmatprep.subr.mxu0 0.0
        %1195 = vmatpush1.msra.mxu0 %v1174
        %1196 = vmatprep.subr.mxu0 0.0
        %1197 = vmatpush1.msra.mxu0 %v1173
        %1198 = vmatprep.subr.mxu0 0.0
        %1199 = vmatpush1.msra.mxu0 %v1172
        %1200 = vmatprep.subr.mxu0 0.0
        %1201 = vmatpush1.msra.mxu0 %v1171
        %1202 = vmatprep.subr.mxu0 0.0
        %1203 = vmatpush1.msra.mxu0 %v1170
        %1204 = vmatprep.subr.mxu0 0.0
        %1205 = vmatpush1.msra.mxu0 %v1169
        %1206 = vmatprep.subr.mxu0 0.0
        %1207 = vmatpush1.msra.mxu0 %v1168
        %1208 = vmatprep.subr.mxu0 0.0
        %1209 = vmatpush1.msra.mxu0 %v1167
        %1210 = vmatprep.subr.mxu0 0.0
        %1211 = vmatpush1.msra.mxu0 %v1166
        %1212 = vmatprep.subr.mxu0 0.0
        %1213 = vmatpush1.msra.mxu0 %v1165
        %1214 = vmatprep.subr.mxu0 0.0
        %1215 = vmatpush1.msra.mxu0 %v1164
        %1216 = vmatprep.subr.mxu0 0.0
        %1217 = vmatpush1.msra.mxu0 %v1163
        %1218 = vmatprep.subr.mxu0 0.0
        %1219 = vmatpush2.msra.mxu0 0.0
        %1220 = vmatprep.subr.mxu0 0.0
        %1221 = vmatpush2.msra.mxu0 0.0
        %1222 = vmatprep.subr.mxu0 0.0
        %1223 = vmatpush2.msra.mxu0 0.0
        %1224 = vmatprep.subr.mxu0 0.0
        %1225 = vmatpush2.msra.mxu0 0.0
        %1226 = vmatprep.subr.mxu0 0.0
        %1227 = vmatpush2.msra.mxu0 0.0
        %1228 = vmatprep.subr.mxu0 0.0
        %1229 = vmatpush2.msra.mxu0 0.0
        %1230 = vmatprep.subr.mxu0 0.0
        %1231 = vmatpush2.msra.mxu0 0.0
        %1232 = vmatprep.subr.mxu0 0.0
        %1233 = vmatpush2.msra.mxu0 0.0
        %1234 = vmatprep.subr.mxu0 0.0
        %1235 = vmatpush2.msra.mxu0 0.0
        %1236 = vmatprep.subr.mxu0 0.0
        %1237 = vmatpush2.msra.mxu0 0.0
        %1238 = vmatprep.subr.mxu0 0.0
        %1239 = vmatpush2.msra.mxu0 0.0
        %1240 = vmatprep.subr.mxu0 0.0
        %1241 = vmatpush2.msra.mxu0 0.0
        %1242 = vmatprep.subr.mxu0 0.0
        %1243 = vmatpush2.msra.mxu0 0.0
        %1244 = vmatprep.subr.mxu0 0.0
        %1245 = vmatpush2.msra.mxu0 0.0
        %1246 = vmatprep.subr.mxu0 0.0
        %1247 = vmatpush2.msra.mxu0 0.0
        %1248 = vmatprep.subr.mxu0 0.0
        %1249 = vmatpush2.msra.mxu0 0.0
        %1250 = vmatprep.mubr.f32.mxu0 0.0
        %1251 = vmatmul.mubr.f32.gmra.mxu0 %v1160
        %v1252 = vpop.f32.mrf.mxu0
        %v1253 = vadd.f32 %v1184, %v1252
        %v1254 = vpop.f32.mrf.mxu0
        %1255 = vdwg.mxu0
        %v1256 = vadd.f32 %v593, %v1253
        %v1257 = vld [vmem:[#allocation8] sm:$0x1]
        %v1258 = vld [vmem:[%s4] sm:$0x1]
        %1259 = vadd.xlane.f32.xlu0 %v1256
        %v1260 = vpop.xlane.xlu0 %1259
        %v1261 = vmul.f32 %v1260, %v598
        %v1262 = vsub.f32 %v1256, %v1261
        %v1263 = vmul.f32 %v1262, %v1262
        %1264 = vadd.xlane.f32.xlu0 %v1263
        %v1265 = vpop.xlane.xlu0 %1264
        %v1266 = vmul.f32 %v1265, 0.007874016
        %v1267 = vrsqrt.pop %v1266
        %v1268 = vmul.f32 %v1266, %v1267
        %vm1269 = vcmp.eq.f32.partialorder %v1266, inf
        %v1270 = vsel %vm1269, %v1266, %v1268
        %vm1271 = vcmp.eq.f32.partialorder %v1266, 0.0
        %v1272 = vand.u32 %v1266, 2147483648
        %v1273 = vsel %vm1271, %v1272, %v1270
        %v1274 = vadd.f32 %v1273, 1e-06
        %v1275 = vrcp.pop %v1274
        %v1277 = vlaneseq
        %v1278 = vshrl.u32 %v1277, 7
        %v1279 = vsub.s32 0, %v1278
        %v1280 = vrot.slane %v1257, %v1279
        %v1282 = vmul.f32 %v1280, %v1262
        %v1283 = vmul.f32 %v1282, %v1275
        %v1285 = vlaneseq
        %v1286 = vshrl.u32 %v1285, 7
        %v1287 = vsub.s32 0, %v1286
        %v1288 = vrot.slane %v1258, %v1287
        %v1290 = vadd.f32 %v1283, %v1288
        %v1291 = vld [vmem:[#allocation14] sm:$0xff]
        %v1292 = vld [vmem:[#allocation14 + $0x8] sm:$0xff]
        %v1293 = vld [vmem:[#allocation14 + $0x10] sm:$0xff]
        %v1294 = vld [vmem:[#allocation14 + $0x18] sm:$0xff]
        %v1295 = vld [vmem:[#allocation14 + $0x20] sm:$0xff]
        %v1296 = vld [vmem:[#allocation14 + $0x28] sm:$0xff]
        %v1297 = vld [vmem:[#allocation14 + $0x30] sm:$0xff]
        %v1298 = vld [vmem:[#allocation14 + $0x38] sm:$0xff]
        %v1299 = vld [vmem:[#allocation14 + $0x40] sm:$0xff]
        %v1300 = vld [vmem:[#allocation14 + $0x48] sm:$0xff]
        %v1301 = vld [vmem:[#allocation14 + $0x50] sm:$0xff]
        %v1302 = vld [vmem:[#allocation14 + $0x58] sm:$0xff]
        %v1303 = vld [vmem:[#allocation14 + $0x60] sm:$0xff]
        %v1304 = vld [vmem:[#allocation14 + $0x68] sm:$0xff]
        %v1305 = vld [vmem:[#allocation14 + $0x70] sm:$0xff]
        %v1306 = vld [vmem:[#allocation14 + $0x78] sm:$0xff]
        %v1307 = vld [vmem:[#allocation14 + $0x80] sm:$0xff]
        %v1308 = vld [vmem:[#allocation14 + $0x88] sm:$0xff]
        %v1309 = vld [vmem:[#allocation14 + $0x90] sm:$0xff]
        %v1310 = vld [vmem:[#allocation14 + $0x98] sm:$0xff]
        %v1311 = vld [vmem:[#allocation14 + $0xa0] sm:$0xff]
        %v1312 = vld [vmem:[#allocation14 + $0xa8] sm:$0xff]
        %v1313 = vld [vmem:[#allocation14 + $0xb0] sm:$0xff]
        %v1314 = vld [vmem:[#allocation14 + $0xb8] sm:$0xff]
        %v1315 = vld [vmem:[#allocation14 + $0xc0] sm:$0xff]
        %v1316 = vld [vmem:[#allocation14 + $0xc8] sm:$0xff]
        %v1317 = vld [vmem:[#allocation14 + $0xd0] sm:$0xff]
        %v1318 = vld [vmem:[#allocation14 + $0xd8] sm:$0xff]
        %v1319 = vld [vmem:[#allocation14 + $0xe0] sm:$0xff]
        %v1320 = vld [vmem:[#allocation14 + $0xe8] sm:$0xff]
        %v1321 = vld [vmem:[#allocation14 + $0xf0] sm:$0xff]
        %v1322 = vld [vmem:[#allocation14 + $0xf8] sm:$0xff]
        %v1323 = vld [vmem:[%s11] sm:$0x3]
        %v1325 = vlaneseq
        %v1326 = vshrl.u32 %v1325, 7
        %v1327 = vsub.s32 0, %v1326
        %v1328 = vrot.slane %v1323, %v1327
        %v1329 = vlaneseq
        %v1330 = vshrl.u32 %v1329, 7
        %v1331 = vsub.s32 1, %v1330
        %v1332 = vrot.slane %v1323, %v1331
        %1335 = vmatprep.subr.mxu0 %v1322
        %1336 = vmatpush1.msra.mxu0 %v1321
        %1337 = vmatprep.subr.mxu0 %v1320
        %1338 = vmatpush1.msra.mxu0 %v1319
        %1339 = vmatprep.subr.mxu0 %v1318
        %1340 = vmatpush1.msra.mxu0 %v1317
        %1341 = vmatprep.subr.mxu0 %v1316
        %1342 = vmatpush1.msra.mxu0 %v1315
        %1343 = vmatprep.subr.mxu0 %v1314
        %1344 = vmatpush1.msra.mxu0 %v1313
        %1345 = vmatprep.subr.mxu0 %v1312
        %1346 = vmatpush1.msra.mxu0 %v1311
        %1347 = vmatprep.subr.mxu0 %v1310
        %1348 = vmatpush1.msra.mxu0 %v1309
        %1349 = vmatprep.subr.mxu0 %v1308
        %1350 = vmatpush1.msra.mxu0 %v1307
        %1351 = vmatprep.subr.mxu0 %v1306
        %1352 = vmatpush1.msra.mxu0 %v1305
        %1353 = vmatprep.subr.mxu0 %v1304
        %1354 = vmatpush1.msra.mxu0 %v1303
        %1355 = vmatprep.subr.mxu0 %v1302
        %1356 = vmatpush1.msra.mxu0 %v1301
        %1357 = vmatprep.subr.mxu0 %v1300
        %1358 = vmatpush1.msra.mxu0 %v1299
        %1359 = vmatprep.subr.mxu0 %v1298
        %1360 = vmatpush1.msra.mxu0 %v1297
        %1361 = vmatprep.subr.mxu0 %v1296
        %1362 = vmatpush1.msra.mxu0 %v1295
        %1363 = vmatprep.subr.mxu0 %v1294
        %1364 = vmatpush1.msra.mxu0 %v1293
        %1365 = vmatprep.subr.mxu0 %v1292
        %1366 = vmatpush1.msra.mxu0 %v1291
        %1367 = vmatprep.subr.mxu0 0.0
        %1368 = vmatpush2.msra.mxu0 0.0
        %1369 = vmatprep.subr.mxu0 0.0
        %1370 = vmatpush2.msra.mxu0 0.0
        %1371 = vmatprep.subr.mxu0 0.0
        %1372 = vmatpush2.msra.mxu0 0.0
        %1373 = vmatprep.subr.mxu0 0.0
        %1374 = vmatpush2.msra.mxu0 0.0
        %1375 = vmatprep.subr.mxu0 0.0
        %1376 = vmatpush2.msra.mxu0 0.0
        %1377 = vmatprep.subr.mxu0 0.0
        %1378 = vmatpush2.msra.mxu0 0.0
        %1379 = vmatprep.subr.mxu0 0.0
        %1380 = vmatpush2.msra.mxu0 0.0
        %1381 = vmatprep.subr.mxu0 0.0
        %1382 = vmatpush2.msra.mxu0 0.0
        %1383 = vmatprep.subr.mxu0 0.0
        %1384 = vmatpush2.msra.mxu0 0.0
        %1385 = vmatprep.subr.mxu0 0.0
        %1386 = vmatpush2.msra.mxu0 0.0
        %1387 = vmatprep.subr.mxu0 0.0
        %1388 = vmatpush2.msra.mxu0 0.0
        %1389 = vmatprep.subr.mxu0 0.0
        %1390 = vmatpush2.msra.mxu0 0.0
        %1391 = vmatprep.subr.mxu0 0.0
        %1392 = vmatpush2.msra.mxu0 0.0
        %1393 = vmatprep.subr.mxu0 0.0
        %1394 = vmatpush2.msra.mxu0 0.0
        %1395 = vmatprep.subr.mxu0 0.0
        %1396 = vmatpush2.msra.mxu0 0.0
        %1397 = vmatprep.subr.mxu0 0.0
        %1398 = vmatpush2.msra.mxu0 0.0
        %1399 = vmatprep.mubr.f32.mxu0 0.0
        %1400 = vmatmul.mubr.f32.gmra.mxu0 %v1290
        %v1401 = vpop.f32.mrf.mxu0
        %v1402 = vadd.f32 %v1328, %v1401
        %v1403 = vpop.f32.mrf.mxu0
        %v1404 = vadd.f32 %v1332, %v1403
        %1405 = vdwg.mxu0
        %v1406 = vmax.f32 %v1402, 0.0
        %v1407 = vmax.f32 %v1404, 0.0
        %v1408 = vld [vmem:[#allocation16] sm:$0xff]
        %v1409 = vld [vmem:[#allocation16 + $0x8] sm:$0xff]
        %v1410 = vld [vmem:[#allocation16 + $0x10] sm:$0xff]
        %v1411 = vld [vmem:[#allocation16 + $0x18] sm:$0xff]
        %v1412 = vld [vmem:[#allocation16 + $0x20] sm:$0xff]
        %v1413 = vld [vmem:[#allocation16 + $0x28] sm:$0xff]
        %v1414 = vld [vmem:[#allocation16 + $0x30] sm:$0xff]
        %v1415 = vld [vmem:[#allocation16 + $0x38] sm:$0xff]
        %v1416 = vld [vmem:[#allocation16 + $0x40] sm:$0xff]
        %v1417 = vld [vmem:[#allocation16 + $0x48] sm:$0xff]
        %v1418 = vld [vmem:[#allocation16 + $0x50] sm:$0xff]
        %v1419 = vld [vmem:[#allocation16 + $0x58] sm:$0xff]
        %v1420 = vld [vmem:[#allocation16 + $0x60] sm:$0xff]
        %v1421 = vld [vmem:[#allocation16 + $0x68] sm:$0xff]
        %v1422 = vld [vmem:[#allocation16 + $0x70] sm:$0xff]
        %v1423 = vld [vmem:[#allocation16 + $0x78] sm:$0xff]
        %v1424 = vld [vmem:[#allocation16 + $0x80] sm:$0xff]
        %v1425 = vld [vmem:[#allocation16 + $0x88] sm:$0xff]
        %v1426 = vld [vmem:[#allocation16 + $0x90] sm:$0xff]
        %v1427 = vld [vmem:[#allocation16 + $0x98] sm:$0xff]
        %v1428 = vld [vmem:[#allocation16 + $0xa0] sm:$0xff]
        %v1429 = vld [vmem:[#allocation16 + $0xa8] sm:$0xff]
        %v1430 = vld [vmem:[#allocation16 + $0xb0] sm:$0xff]
        %v1431 = vld [vmem:[#allocation16 + $0xb8] sm:$0xff]
        %v1432 = vld [vmem:[#allocation16 + $0xc0] sm:$0xff]
        %v1433 = vld [vmem:[#allocation16 + $0xc8] sm:$0xff]
        %v1434 = vld [vmem:[#allocation16 + $0xd0] sm:$0xff]
        %v1435 = vld [vmem:[#allocation16 + $0xd8] sm:$0xff]
        %v1436 = vld [vmem:[#allocation16 + $0xe0] sm:$0xff]
        %v1437 = vld [vmem:[#allocation16 + $0xe8] sm:$0xff]
        %v1438 = vld [vmem:[#allocation16 + $0xf0] sm:$0xff]
        %v1439 = vld [vmem:[#allocation16 + $0xf8] sm:$0xff]
        %v1440 = vld [vmem:[%s13] sm:$0x1]
        %v1442 = vlaneseq
        %v1443 = vshrl.u32 %v1442, 7
        %v1444 = vsub.s32 0, %v1443
        %v1445 = vrot.slane %v1440, %v1444
        %1447 = vmatprep.subr.mxu0 0.0
        %1448 = vmatpush1.msra.mxu0 %v1423
        %1449 = vmatprep.subr.mxu0 0.0
        %1450 = vmatpush1.msra.mxu0 %v1422
        %1451 = vmatprep.subr.mxu0 0.0
        %1452 = vmatpush1.msra.mxu0 %v1421
        %1453 = vmatprep.subr.mxu0 0.0
        %1454 = vmatpush1.msra.mxu0 %v1420
        %1455 = vmatprep.subr.mxu0 0.0
        %1456 = vmatpush1.msra.mxu0 %v1419
        %1457 = vmatprep.subr.mxu0 0.0
        %1458 = vmatpush1.msra.mxu0 %v1418
        %1459 = vmatprep.subr.mxu0 0.0
        %1460 = vmatpush1.msra.mxu0 %v1417
        %1461 = vmatprep.subr.mxu0 0.0
        %1462 = vmatpush1.msra.mxu0 %v1416
        %1463 = vmatprep.subr.mxu0 0.0
        %1464 = vmatpush1.msra.mxu0 %v1415
        %1465 = vmatprep.subr.mxu0 0.0
        %1466 = vmatpush1.msra.mxu0 %v1414
        %1467 = vmatprep.subr.mxu0 0.0
        %1468 = vmatpush1.msra.mxu0 %v1413
        %1469 = vmatprep.subr.mxu0 0.0
        %1470 = vmatpush1.msra.mxu0 %v1412
        %1471 = vmatprep.subr.mxu0 0.0
        %1472 = vmatpush1.msra.mxu0 %v1411
        %1473 = vmatprep.subr.mxu0 0.0
        %1474 = vmatpush1.msra.mxu0 %v1410
        %1475 = vmatprep.subr.mxu0 0.0
        %1476 = vmatpush1.msra.mxu0 %v1409
        %1477 = vmatprep.subr.mxu0 0.0
        %1478 = vmatpush1.msra.mxu0 %v1408
        %1479 = vmatprep.subr.mxu0 0.0
        %1480 = vmatpush2.msra.mxu0 %v1439
        %1481 = vmatprep.subr.mxu0 0.0
        %1482 = vmatpush2.msra.mxu0 %v1438
        %1483 = vmatprep.subr.mxu0 0.0
        %1484 = vmatpush2.msra.mxu0 %v1437
        %1485 = vmatprep.subr.mxu0 0.0
        %1486 = vmatpush2.msra.mxu0 %v1436
        %1487 = vmatprep.subr.mxu0 0.0
        %1488 = vmatpush2.msra.mxu0 %v1435
        %1489 = vmatprep.subr.mxu0 0.0
        %1490 = vmatpush2.msra.mxu0 %v1434
        %1491 = vmatprep.subr.mxu0 0.0
        %1492 = vmatpush2.msra.mxu0 %v1433
        %1493 = vmatprep.subr.mxu0 0.0
        %1494 = vmatpush2.msra.mxu0 %v1432
        %1495 = vmatprep.subr.mxu0 0.0
        %1496 = vmatpush2.msra.mxu0 %v1431
        %1497 = vmatprep.subr.mxu0 0.0
        %1498 = vmatpush2.msra.mxu0 %v1430
        %1499 = vmatprep.subr.mxu0 0.0
        %1500 = vmatpush2.msra.mxu0 %v1429
        %1501 = vmatprep.subr.mxu0 0.0
        %1502 = vmatpush2.msra.mxu0 %v1428
        %1503 = vmatprep.subr.mxu0 0.0
        %1504 = vmatpush2.msra.mxu0 %v1427
        %1505 = vmatprep.subr.mxu0 0.0
        %1506 = vmatpush2.msra.mxu0 %v1426
        %1507 = vmatprep.subr.mxu0 0.0
        %1508 = vmatpush2.msra.mxu0 %v1425
        %1509 = vmatprep.subr.mxu0 0.0
        %1510 = vmatpush2.msra.mxu0 %v1424
        %1511 = vmatprep.mubr.f32.mxu0 %v1407
        %1512 = vmatmul.mubr.f32.gmra.mxu0 %v1406
        %v1513 = vpop.f32.mrf.mxu0
        %v1514 = vadd.f32 %v1445, %v1513
        %v1515 = vpop.f32.mrf.mxu0
        %1516 = vdwg.mxu0
        %v1517 = vadd.f32 %v1256, %v1514
        %1518 = vst [vmem:[%s592] sm:$0xff] %v1517
        %s1519 = sand.u32 %s342, 1
        %s1520 = scalar_lea.sflag [#allocation4], %s1519
        %s1521 = sand.u32 %s342, 1
        %s1522 = smul.addr %s1521, 8
        %s1523 = scalar_lea.vmem [#allocation17], %s1522
        // Predicated region
        $region113: #{tpu_custom_call.1} parent=75 // pred_check
          %p1524 = pneg %p352
        $region114: #{tpu_custom_call.1} parent=75 // pred_check_branch
          %1526 = sbr.rel (%p1524) target = $region116
        $region115: #{tpu_custom_call.1} parent=75 // pred_region
          %s1528 = ssub.s32 128, 128
          %1529 = vsyncadd %s1520, %s1528
          %s1530 = smul.addr %s35, 128
          %s1531 = scalar_lea.hbm %s14, %s1530
          %s1533 = sshll.u32 %s1523, 4
          %s1534 = int_to_ptr.vmem [resolvable:$true] %s1533
          %1536 = dma.vmem_to_hbm [thread:$0]  %s1534, 128, %s1531, %s1520
        $region116: #{tpu_custom_call.1} parent=75 // pred_fallthru
          _
      $region76: #{tpu_custom_call.1} parent=5 // pred_fallthru
        _
      %p1537 = scmp.le.s32.totalorder 2, %s30
      // Predicated region
      $region117: #{tpu_custom_call.1} parent=5 // pred_check
        %p1538 = pneg %p1537
      $region118: #{tpu_custom_call.1} parent=5 // pred_check_branch
        %1540 = sbr.rel (%p1538) target = $region120
      $region119: #{tpu_custom_call.1} parent=5 // pred_region
        %s1541 = ssub.s32 %s30, 2
        // Predicated region
        $region121: #{tpu_custom_call.1} parent=119 // pred_check
          %p1542 = pneg %p358
        $region122: #{tpu_custom_call.1} parent=119 // pred_check_branch
          %1544 = sbr.rel (%p1542) target = $region124
        $region123: #{tpu_custom_call.1} parent=119 // pred_region
          %s1545 = sand.u32 %s343, 1
          %s1546 = scalar_lea.sflag [#allocation4], %s1545
          %s1547 = sand.u32 %s343, 1
          %s1548 = smul.addr %s1547, 8
          %s1549 = scalar_lea.vmem [#allocation17], %s1548
          %1550 = dma.done %s1546, 128
        $region124: #{tpu_custom_call.1} parent=119 // pred_fallthru
          _
      $region120: #{tpu_custom_call.1} parent=5 // pred_fallthru
        _
    $region6: #{tpu_custom_call.1} parent=1 // loop_footer
      %s34 = sadd.s32 1, %s30
    $region7: #{tpu_custom_call.1} parent=1 // loop_footer_branch
      %29 = sbr.rel target = $region3
    $region8: #{tpu_custom_call.1} parent=1 // loop_exit
      _
    %1551 = vsyncpa [#allocation3], 1
    %s1552 = scalar_lea.sflag [#allocation3], 1
    %1553 = vsyncpa %s1552, 1
    %1554 = vsyncpa [#allocation6], 1
    %1555 = vsyncpa [#allocation9], 1
    %1556 = vsyncpa [#allocation12], 1
    %1557 = vsyncpa [#allocation15], 1
    %1558 = vsyncpa [#allocation4], 1
    %s1559 = scalar_lea.sflag [#allocation4], 1
    %1560 = vsyncpa %s1559, 1

</llo_original>
